<compile_context>
chip_gen: v7x
topology: tpu7x:2x2x1
jax: 0.10.0
libtpu: 0.0.40
codegen_flags: <defaults>
</compile_context>

<pallas_src>
import functools

import jax
import jax.numpy as jnp
from jax import lax
from jax.experimental import pallas as pl
from jax.experimental.pallas import tpu as pltpu


def autopad(k, p=None, d=1):
    if d > 1:
        k = d * (k - 1) + 1 if isinstance(k, int) else [d * (x - 1) + 1 for x in k]
    if p is None:
        p = k // 2 if isinstance(k, int) else [x // 2 for x in k]
    return p


def _round_up(x, m):
    return (x + m - 1) // m * m


def _pick_batch_tile(n):
    """Largest divisor of n that keeps >=2 grid steps (v7x has 2 TCs)."""
    if n <= 2:
        return 1
    nb = n // 2
    while n % nb:
        nb -= 1
    return nb


def _conv_bn_silu_kernel(x_ref, w_ref, shift_ref, o_ref, *, Nb, KH, KW, Wp, CPAD):
    """One grid step = Nb images.

    x_ref:     (Nb, C1, Lp)     zero-padded, flattened images (bf16)
    w_ref:     (KH*KW, C2, C1)  BN-scaled conv weights, one (kh,kw) tap per
                                leading index (bf16)
    shift_ref: (C2, 1)          folded BN shift (f32)
    o_ref:     (Nb, C2, CPAD)   lane-dense output columns (out dtype)
    """
    shift = shift_ref[...]                                        # (C2, 1) f32
    for n in range(Nb):
        acc = None
        for kh in range(KH):
            for kw in range(KW):
                k = kh * KW + kw
                off = kh * Wp + kw                                 # static offset
                # Contiguous lane-shifted window of the flattened image:
                # column j of `slab` is x_pad[:, h+kh, w+kw] for j = h*Wp + w.
                slab = x_ref[n, :, off:off + CPAD]                 # (C1, CPAD) bf16
                part = jnp.dot(w_ref[k], slab,
                               preferred_element_type=jnp.float32)  # (C2, CPAD) f32
                acc = part if acc is None else acc + part
        y = acc + shift                                            # BN shift
        o_ref[n] = (y * jax.nn.sigmoid(y)).astype(o_ref.dtype)     # SiLU


def conv_bn_silu(x_nchw, weight_oihw, gamma, beta, running_mean, running_var,
                 eps=1e-5, *, stride=1, dilation=1, groups=1,
                 out_dtype=jnp.bfloat16, batch_tile=None):
    """Forward of Conv(c1, c2, k, s=1): SiLU(BN(Conv2d(x))), inference BN."""
    # Hard assumptions of this kernel -- assert so misuse can't silently
    # produce wrong results (review correctness note).
    assert stride == 1 and dilation == 1 and groups == 1, \
        "only stride=1, dilation=1, groups=1 is implemented"
    N, C1, H, W = x_nchw.shape
    C2, C1w, KH, KW = weight_oihw.shape
    assert C1w == C1, "grouped conv not implemented"
    assert KH == KW and KH % 2 == 1, "only odd square kernels are implemented"

    p = autopad(KH)                       # same padding for odd k, stride 1
    Hp, Wp = H + 2 * p, W + 2 * p

    Nb = _pick_batch_tile(N) if batch_tile is None else batch_tile
    assert N % Nb == 0, "batch_tile must divide the batch size"

    # Lane-dense column block: one column per padded-width output position,
    # rounded up to a multiple of 128 so all output stores are unmasked vst.
    CPAD = _round_up(H * Wp, 128)
    # Flattened-input length: largest tap offset + CPAD, lane aligned.
    Lp = _round_up((KH - 1) * Wp + (KW - 1) + CPAD, 128)

    # Fold BN (running stats) into per-out-channel scale/shift; fold the scale
    # straight into the conv weights so the kernel only adds `shift`.
    inv_std = lax.rsqrt(running_var.astype(jnp.float32) + eps)
    scale = gamma.astype(jnp.float32) * inv_std                        # (C2,)
    shift = (beta.astype(jnp.float32)
             - running_mean.astype(jnp.float32) * scale).reshape(C2, 1)

    w_scaled = weight_oihw.astype(jnp.float32) * scale[:, None, None, None]
    # OIHW -> (KH*KW, C2, C1): one (C2, C1) tap matrix per leading index.
    w_taps = jnp.transpose(w_scaled, (2, 3, 0, 1)).reshape(KH * KW, C2, C1)
    w_taps = w_taps.astype(jnp.bfloat16)

    # Zero-pad spatially, flatten (Hp, Wp) -> Hp*Wp, zero-pad the tail to Lp.
    x_pad = jnp.pad(x_nchw, ((0, 0), (0, 0), (p, p), (p, p)))
    x_flat = x_pad.reshape(N, C1, Hp * Wp)
    x_flat = jnp.pad(x_flat, ((0, 0), (0, 0), (0, Lp - Hp * Wp)))
    x_flat = x_flat.astype(jnp.bfloat16)

    kernel = functools.partial(_conv_bn_silu_kernel,
                               Nb=Nb, KH=KH, KW=KW, Wp=Wp, CPAD=CPAD)

    out_bytes = jnp.dtype(out_dtype).itemsize
    cost = pl.CostEstimate(
        flops=2 * N * C2 * C1 * KH * KW * CPAD,
        transcendentals=N * C2 * CPAD,
        bytes_accessed=(x_flat.size * 2 + w_taps.size * 2 + shift.size * 4
                        + N * C2 * CPAD * out_bytes),
    )

    out = pl.pallas_call(
        kernel,
        out_shape=jax.ShapeDtypeStruct((N, C2, CPAD), out_dtype),
        grid_spec=pltpu.PrefetchScalarGridSpec(
            num_scalar_prefetch=0,
            grid=(N // Nb,),
            in_specs=[
                pl.BlockSpec((Nb, C1, Lp), lambda i: (i, 0, 0)),
                pl.BlockSpec((KH * KW, C2, C1), lambda i: (0, 0, 0)),
                pl.BlockSpec((C2, 1), lambda i: (0, 0)),
            ],
            out_specs=pl.BlockSpec((Nb, C2, CPAD), lambda i: (i, 0, 0)),
        ),
        compiler_params=pltpu.CompilerParams(
            dimension_semantics=("parallel",),
            vmem_limit_bytes=32 * 1024 * 1024,
        ),
        cost_estimate=cost,
    )(x_flat, w_taps, shift)

    # Crop the padded-width garbage columns: (N, C2, CPAD) -> (N, C2, H, W).
    out = out[:, :, :H * Wp].reshape(N, C2, H, Wp)[:, :, :, :W]
    return out


def _reference(x, weight, gamma, beta, running_mean, running_var,
               eps=1e-5, compute_dtype=jnp.float32):
    """Plain-JAX reference; compute_dtype=bf16 mirrors the kernel's operand cast."""
    p = autopad(weight.shape[2])
    inv_std = lax.rsqrt(running_var + eps)
    scale = gamma * inv_std
    shift = beta - running_mean * scale
    w_scaled = (weight * scale[:, None, None, None]).astype(compute_dtype)
    y = lax.conv_general_dilated(
        x.astype(compute_dtype), w_scaled,
        window_strides=(1, 1), padding=((p, p), (p, p)),
        dimension_numbers=("NCHW", "OIHW", "NCHW"),
        preferred_element_type=jnp.float32,
    )
    y = y + shift[None, :, None, None]
    return y * jax.nn.sigmoid(y)


if __name__ == "__main__":
    # Module config: Conv(c1=4, c2=8, k=3, s=1) -> autopad gives p=1.
    N, C1, H, W = 2, 4, 16, 16
    C2, K = 8, 3

    key = jax.random.PRNGKey(0)
    kx, kw_, km, kv, kg, kb = jax.random.split(key, 6)

    x = jax.random.normal(kx, (N, C1, H, W), dtype=jnp.float32)
    weight = 0.1 * jax.random.normal(kw_, (C2, C1, K, K), dtype=jnp.float32)

    # Deterministic (synthetic) BatchNorm running statistics / affine params.
    gamma = 1.0 + 0.1 * jax.random.normal(kg, (C2,), dtype=jnp.float32)
    beta = 0.1 * jax.random.normal(kb, (C2,), dtype=jnp.float32)
    running_mean = 0.05 * jax.random.normal(km, (C2,), dtype=jnp.float32)
    running_var = 1.0 + 0.1 * jax.random.uniform(kv, (C2,), dtype=jnp.float32)

    out = conv_bn_silu(x, weight, gamma, beta, running_mean, running_var)
    out = jax.block_until_ready(out)
    assert out.shape == (N, C2, H, W), out.shape
    out_f32 = out.astype(jnp.float32)

    # Check vs a reference using the same bf16 operand cast (and bf16 output
    # quantization, matching the kernel's out dtype).
    ref_bf16 = _reference(x, weight, gamma, beta, running_mean, running_var,
                          compute_dtype=jnp.bfloat16)
    ref_bf16_q = ref_bf16.astype(jnp.bfloat16).astype(jnp.float32)
    assert jnp.allclose(out_f32, ref_bf16_q, atol=2e-2, rtol=2e-2), \
        float(jnp.max(jnp.abs(out_f32 - ref_bf16_q)))

    # Sanity check vs the full-f32 pipeline (loose: bf16 quantization effects).
    ref_f32 = _reference(x, weight, gamma, beta, running_mean, running_var,
                         compute_dtype=jnp.float32)
    assert jnp.allclose(out_f32, ref_f32, atol=5e-2, rtol=5e-2), \
        float(jnp.max(jnp.abs(out_f32 - ref_f32)))

    print("KERNEL_OK")
</pallas_src>

<mosaic_0001>
module attributes {stable_mosaic.version = 11 : i64} {
  func.func @_conv_bn_silu_kernel(%arg0: i32, %arg1: memref<1x4x512xbf16, #tpu.memory_space<vmem>>, %arg2: memref<9x8x4xbf16, #tpu.memory_space<vmem>>, %arg3: memref<8x1xf32, #tpu.memory_space<vmem>>, %arg4: memref<1x8x384xbf16, #tpu.memory_space<vmem>>) attributes {dimension_semantics = [#tpu.dimension_semantics<parallel>], iteration_bounds = array<i64: 2>, scalar_prefetch = 0 : i64, scratch_operands = 0 : i64, tpu.core_type = #tpu.core_type<tc>, window_params = [{transform_indices = @transform_0, window_bounds = array<i64: 1, 4, 512>}, {pipeline_mode = #tpu.pipeline_mode<synchronous>, transform_indices = @transform_1, window_bounds = array<i64: 9, 8, 4>}, {pipeline_mode = #tpu.pipeline_mode<synchronous>, transform_indices = @transform_2, window_bounds = array<i64: 8, 1>}, {transform_indices = @transform_3, window_bounds = array<i64: 1, 8, 384>}]} {
    %c0 = arith.constant 0 : index
    %c0_0 = arith.constant 0 : index
    %0 = vector.load %arg3[%c0, %c0_0] : memref<8x1xf32, #tpu.memory_space<vmem>>, vector<8x1xf32>
    %c0_1 = arith.constant 0 : index
    %c0_2 = arith.constant 0 : index
    %c0_3 = arith.constant 0 : index
    %1 = vector.load %arg1[%c0_1, %c0_2, %c0_3] : memref<1x4x512xbf16, #tpu.memory_space<vmem>>, vector<1x4x384xbf16>
    %2 = vector.shape_cast %1 : vector<1x4x384xbf16> to vector<4x384xbf16>
    %c0_4 = arith.constant 0 : index
    %c0_5 = arith.constant 0 : index
    %c0_6 = arith.constant 0 : index
    %3 = vector.load %arg2[%c0_4, %c0_5, %c0_6] : memref<9x8x4xbf16, #tpu.memory_space<vmem>>, vector<1x8x4xbf16>
    %4 = vector.shape_cast %3 : vector<1x8x4xbf16> to vector<8x4xbf16>
    %cst = arith.constant dense<0.000000e+00> : vector<8x384xf32>
    %5 = tpu.matmul %4, %2, %cst {dimension_numbers = #tpu.dot_dimension_numbers<[1], [0], [0], [1], [0, 0, 1, 1], [], []>} : vector<8x4xbf16>, vector<4x384xbf16>, vector<8x384xf32> -> vector<8x384xf32>
    %c0_7 = arith.constant 0 : index
    %c0_8 = arith.constant 0 : index
    %c1 = arith.constant 1 : index
    %6 = vector.load %arg1[%c0_7, %c0_8, %c1] : memref<1x4x512xbf16, #tpu.memory_space<vmem>>, vector<1x4x384xbf16>
    %7 = vector.shape_cast %6 : vector<1x4x384xbf16> to vector<4x384xbf16>
    %c1_9 = arith.constant 1 : index
    %c0_10 = arith.constant 0 : index
    %c0_11 = arith.constant 0 : index
    %8 = vector.load %arg2[%c1_9, %c0_10, %c0_11] : memref<9x8x4xbf16, #tpu.memory_space<vmem>>, vector<1x8x4xbf16>
    %9 = vector.shape_cast %8 : vector<1x8x4xbf16> to vector<8x4xbf16>
    %cst_12 = arith.constant dense<0.000000e+00> : vector<8x384xf32>
    %10 = tpu.matmul %9, %7, %cst_12 {dimension_numbers = #tpu.dot_dimension_numbers<[1], [0], [0], [1], [0, 0, 1, 1], [], []>} : vector<8x4xbf16>, vector<4x384xbf16>, vector<8x384xf32> -> vector<8x384xf32>
    %11 = arith.addf %5, %10 : vector<8x384xf32>
    %c0_13 = arith.constant 0 : index
    %c0_14 = arith.constant 0 : index
    %c2 = arith.constant 2 : index
    %12 = vector.load %arg1[%c0_13, %c0_14, %c2] : memref<1x4x512xbf16, #tpu.memory_space<vmem>>, vector<1x4x384xbf16>
    %13 = vector.shape_cast %12 : vector<1x4x384xbf16> to vector<4x384xbf16>
    %c2_15 = arith.constant 2 : index
    %c0_16 = arith.constant 0 : index
    %c0_17 = arith.constant 0 : index
    %14 = vector.load %arg2[%c2_15, %c0_16, %c0_17] : memref<9x8x4xbf16, #tpu.memory_space<vmem>>, vector<1x8x4xbf16>
    %15 = vector.shape_cast %14 : vector<1x8x4xbf16> to vector<8x4xbf16>
    %cst_18 = arith.constant dense<0.000000e+00> : vector<8x384xf32>
    %16 = tpu.matmul %15, %13, %cst_18 {dimension_numbers = #tpu.dot_dimension_numbers<[1], [0], [0], [1], [0, 0, 1, 1], [], []>} : vector<8x4xbf16>, vector<4x384xbf16>, vector<8x384xf32> -> vector<8x384xf32>
    %17 = arith.addf %11, %16 : vector<8x384xf32>
    %c0_19 = arith.constant 0 : index
    %c0_20 = arith.constant 0 : index
    %c18 = arith.constant 18 : index
    %18 = vector.load %arg1[%c0_19, %c0_20, %c18] : memref<1x4x512xbf16, #tpu.memory_space<vmem>>, vector<1x4x384xbf16>
    %19 = vector.shape_cast %18 : vector<1x4x384xbf16> to vector<4x384xbf16>
    %c3 = arith.constant 3 : index
    %c0_21 = arith.constant 0 : index
    %c0_22 = arith.constant 0 : index
    %20 = vector.load %arg2[%c3, %c0_21, %c0_22] : memref<9x8x4xbf16, #tpu.memory_space<vmem>>, vector<1x8x4xbf16>
    %21 = vector.shape_cast %20 : vector<1x8x4xbf16> to vector<8x4xbf16>
    %cst_23 = arith.constant dense<0.000000e+00> : vector<8x384xf32>
    %22 = tpu.matmul %21, %19, %cst_23 {dimension_numbers = #tpu.dot_dimension_numbers<[1], [0], [0], [1], [0, 0, 1, 1], [], []>} : vector<8x4xbf16>, vector<4x384xbf16>, vector<8x384xf32> -> vector<8x384xf32>
    %23 = arith.addf %17, %22 : vector<8x384xf32>
    %c0_24 = arith.constant 0 : index
    %c0_25 = arith.constant 0 : index
    %c19 = arith.constant 19 : index
    %24 = vector.load %arg1[%c0_24, %c0_25, %c19] : memref<1x4x512xbf16, #tpu.memory_space<vmem>>, vector<1x4x384xbf16>
    %25 = vector.shape_cast %24 : vector<1x4x384xbf16> to vector<4x384xbf16>
    %c4 = arith.constant 4 : index
    %c0_26 = arith.constant 0 : index
    %c0_27 = arith.constant 0 : index
    %26 = vector.load %arg2[%c4, %c0_26, %c0_27] : memref<9x8x4xbf16, #tpu.memory_space<vmem>>, vector<1x8x4xbf16>
    %27 = vector.shape_cast %26 : vector<1x8x4xbf16> to vector<8x4xbf16>
    %cst_28 = arith.constant dense<0.000000e+00> : vector<8x384xf32>
    %28 = tpu.matmul %27, %25, %cst_28 {dimension_numbers = #tpu.dot_dimension_numbers<[1], [0], [0], [1], [0, 0, 1, 1], [], []>} : vector<8x4xbf16>, vector<4x384xbf16>, vector<8x384xf32> -> vector<8x384xf32>
    %29 = arith.addf %23, %28 : vector<8x384xf32>
    %c0_29 = arith.constant 0 : index
    %c0_30 = arith.constant 0 : index
    %c20 = arith.constant 20 : index
    %30 = vector.load %arg1[%c0_29, %c0_30, %c20] : memref<1x4x512xbf16, #tpu.memory_space<vmem>>, vector<1x4x384xbf16>
    %31 = vector.shape_cast %30 : vector<1x4x384xbf16> to vector<4x384xbf16>
    %c5 = arith.constant 5 : index
    %c0_31 = arith.constant 0 : index
    %c0_32 = arith.constant 0 : index
    %32 = vector.load %arg2[%c5, %c0_31, %c0_32] : memref<9x8x4xbf16, #tpu.memory_space<vmem>>, vector<1x8x4xbf16>
    %33 = vector.shape_cast %32 : vector<1x8x4xbf16> to vector<8x4xbf16>
    %cst_33 = arith.constant dense<0.000000e+00> : vector<8x384xf32>
    %34 = tpu.matmul %33, %31, %cst_33 {dimension_numbers = #tpu.dot_dimension_numbers<[1], [0], [0], [1], [0, 0, 1, 1], [], []>} : vector<8x4xbf16>, vector<4x384xbf16>, vector<8x384xf32> -> vector<8x384xf32>
    %35 = arith.addf %29, %34 : vector<8x384xf32>
    %c0_34 = arith.constant 0 : index
    %c0_35 = arith.constant 0 : index
    %c36 = arith.constant 36 : index
    %36 = vector.load %arg1[%c0_34, %c0_35, %c36] : memref<1x4x512xbf16, #tpu.memory_space<vmem>>, vector<1x4x384xbf16>
    %37 = vector.shape_cast %36 : vector<1x4x384xbf16> to vector<4x384xbf16>
    %c6 = arith.constant 6 : index
    %c0_36 = arith.constant 0 : index
    %c0_37 = arith.constant 0 : index
    %38 = vector.load %arg2[%c6, %c0_36, %c0_37] : memref<9x8x4xbf16, #tpu.memory_space<vmem>>, vector<1x8x4xbf16>
    %39 = vector.shape_cast %38 : vector<1x8x4xbf16> to vector<8x4xbf16>
    %cst_38 = arith.constant dense<0.000000e+00> : vector<8x384xf32>
    %40 = tpu.matmul %39, %37, %cst_38 {dimension_numbers = #tpu.dot_dimension_numbers<[1], [0], [0], [1], [0, 0, 1, 1], [], []>} : vector<8x4xbf16>, vector<4x384xbf16>, vector<8x384xf32> -> vector<8x384xf32>
    %41 = arith.addf %35, %40 : vector<8x384xf32>
    %c0_39 = arith.constant 0 : index
    %c0_40 = arith.constant 0 : index
    %c37 = arith.constant 37 : index
    %42 = vector.load %arg1[%c0_39, %c0_40, %c37] : memref<1x4x512xbf16, #tpu.memory_space<vmem>>, vector<1x4x384xbf16>
    %43 = vector.shape_cast %42 : vector<1x4x384xbf16> to vector<4x384xbf16>
    %c7 = arith.constant 7 : index
    %c0_41 = arith.constant 0 : index
    %c0_42 = arith.constant 0 : index
    %44 = vector.load %arg2[%c7, %c0_41, %c0_42] : memref<9x8x4xbf16, #tpu.memory_space<vmem>>, vector<1x8x4xbf16>
    %45 = vector.shape_cast %44 : vector<1x8x4xbf16> to vector<8x4xbf16>
    %cst_43 = arith.constant dense<0.000000e+00> : vector<8x384xf32>
    %46 = tpu.matmul %45, %43, %cst_43 {dimension_numbers = #tpu.dot_dimension_numbers<[1], [0], [0], [1], [0, 0, 1, 1], [], []>} : vector<8x4xbf16>, vector<4x384xbf16>, vector<8x384xf32> -> vector<8x384xf32>
    %47 = arith.addf %41, %46 : vector<8x384xf32>
    %c0_44 = arith.constant 0 : index
    %c0_45 = arith.constant 0 : index
    %c38 = arith.constant 38 : index
    %48 = vector.load %arg1[%c0_44, %c0_45, %c38] : memref<1x4x512xbf16, #tpu.memory_space<vmem>>, vector<1x4x384xbf16>
    %49 = vector.shape_cast %48 : vector<1x4x384xbf16> to vector<4x384xbf16>
    %c8 = arith.constant 8 : index
    %c0_46 = arith.constant 0 : index
    %c0_47 = arith.constant 0 : index
    %50 = vector.load %arg2[%c8, %c0_46, %c0_47] : memref<9x8x4xbf16, #tpu.memory_space<vmem>>, vector<1x8x4xbf16>
    %51 = vector.shape_cast %50 : vector<1x8x4xbf16> to vector<8x4xbf16>
    %cst_48 = arith.constant dense<0.000000e+00> : vector<8x384xf32>
    %52 = tpu.matmul %51, %49, %cst_48 {dimension_numbers = #tpu.dot_dimension_numbers<[1], [0], [0], [1], [0, 0, 1, 1], [], []>} : vector<8x4xbf16>, vector<4x384xbf16>, vector<8x384xf32> -> vector<8x384xf32>
    %53 = arith.addf %47, %52 : vector<8x384xf32>
    %54 = vector.broadcast %0 : vector<8x1xf32> to vector<8x384xf32>
    %55 = arith.addf %53, %54 : vector<8x384xf32>
    %56 = arith.negf %55 : vector<8x384xf32>
    %57 = math.exp %56 : vector<8x384xf32>
    %cst_49 = arith.constant 1.000000e+00 : f32
    %58 = vector.broadcast %cst_49 : f32 to vector<8x384xf32>
    %59 = arith.addf %58, %57 : vector<8x384xf32>
    %60 = arith.divf %58, %59 : vector<8x384xf32>
    %61 = arith.mulf %55, %60 : vector<8x384xf32>
    %62 = arith.truncf %61 : vector<8x384xf32> to vector<8x384xbf16>
    %c0_50 = arith.constant 0 : index
    %c0_51 = arith.constant 0 : index
    %c0_52 = arith.constant 0 : index
    %63 = vector.load %arg4[%c0_50, %c0_51, %c0_52] : memref<1x8x384xbf16, #tpu.memory_space<vmem>>, vector<1x8x384xbf16>
    %64 = vector.shape_cast %63 : vector<1x8x384xbf16> to vector<8x384xbf16>
    %65 = vector.shape_cast %62 : vector<8x384xbf16> to vector<1x8x384xbf16>
    tpu.vector_store %arg4[%c0_50, %c0_51, %c0_52], %65 {strides = array<i32>} : memref<1x8x384xbf16, #tpu.memory_space<vmem>>, vector<1x8x384xbf16>,
    return
  }
  func.func @transform_0(%arg0: i32) -> (i32, i32, i32) {
    %c0_i32 = arith.constant 0 : i32
    %c0_i32_0 = arith.constant 0 : i32
    %c0_i32_1 = arith.constant 0 : i32
    return %arg0, %c0_i32, %c0_i32_0 : i32, i32, i32
  }
  func.func @transform_1(%arg0: i32) -> (i32, i32, i32) {
    %c0_i32 = arith.constant 0 : i32
    %c0_i32_0 = arith.constant 0 : i32
    %c0_i32_1 = arith.constant 0 : i32
    %c0_i32_2 = arith.constant 0 : i32
    return %c0_i32, %c0_i32_0, %c0_i32_1 : i32, i32, i32
  }
  func.func @transform_2(%arg0: i32) -> (i32, i32) {
    %c0_i32 = arith.constant 0 : i32
    %c0_i32_0 = arith.constant 0 : i32
    %c0_i32_1 = arith.constant 0 : i32
    return %c0_i32, %c0_i32_0 : i32, i32
  }
  func.func @transform_3(%arg0: i32) -> (i32, i32, i32) {
    %c0_i32 = arith.constant 0 : i32
    %c0_i32_0 = arith.constant 0 : i32
    %c0_i32_1 = arith.constant 0 : i32
    return %arg0, %c0_i32, %c0_i32_0 : i32, i32, i32
  }
}

</mosaic_0001>

<llo_original>
// kernel: tpu_custom_call.1
$region0: #{tpu_custom_call.1}
  #allocation0 [shape = 'u32[]', space=smem, size = 0x4, offset = 0x4, fixed_abs, tag = 'smem constant byte address 0x4 - core index']
  #allocation1 [shape = 'u32[144,128]{1,0:T(1,128)}', space=vmem, size = 0x12000, scoped, tag = 'internal scratch']
  %s0 = inlined_call_operand.vmem [shape: bf16[2,4,512], index: 0, kind: input, shape index: {}]
  %s1 = inlined_call_operand.vmem [shape: bf16[9,8,4], index: 1, kind: input, shape index: {}]
  %s2 = inlined_call_operand.vmem [shape: f32[8,1], index: 2, kind: input, shape index: {}]
  %s3 = inlined_call_operand.hbm [shape: bf16[2,8,384], index: 3, kind: output, shape index: {}]
  %s4 = sld [smem:[#allocation0]]
  $region45: #{tpu_custom_call.1} parent=0
    _
  %s6 = ssub.s32 1, %s4
  %s7 = scalar_select 0, %s6, %s4
  $region1: #{tpu_custom_call.1} parent=0
    #allocation2 [shape = 'u8[12288]{0}', space=vmem, size = 0x3000, scoped, tag = 'output window, operand 0']
    #allocation3 [shape = 's32[2]{0}', space=sflag, size = 0x8, scoped, tag = 'scoped memory for tpu_custom_call.1']
    %8 = vsyncpa [#allocation3], 0
    %s9 = scalar_lea.sflag [#allocation3], 1
    %10 = vsyncpa %s9, 0
    loop: start=0, step=1, limit=4
    $region2: #{tpu_custom_call.1} parent=1 // loop_pre_header
      _
    $region3: #{tpu_custom_call.1} parent=1 // loop_header
      %s12 = sphi 0, %s16
      %p13 = scmp.ge.s32.totalorder %s12, 4
      %s22 = sphi 0, %s24
      %s25 = sphi 0, %s22
      %s26 = sphi 0, %s25
      %s42 = sphi 0, %s26
      %s46 = sphi 0, %s46
      %s48 = sphi 0, %s46
      %s49 = sphi 0, %s48
      %s63 = sphi 0, %s49
      %s67 = sphi 0, %s67
      %s69 = sphi 0, %s67
      %s70 = sphi 0, %s69
      %s84 = sphi 0, %s70
      %s90 = sphi 0, %s92
      %s93 = sphi 0, %s90
      %s94 = sphi 0, %s93
      %s110 = sphi 0, %s94
    $region4: #{tpu_custom_call.1} parent=1 // loop_header_branch
      %15 = sbr.rel (%p13) target = $region8
    $region5: #{tpu_custom_call.1} parent=1 // loop_body
      %s17 = ssub.s32 %s12, 1
      %s18 = ssub.s32 %s12, 2
      %s19 = sadd.s32 %s12, 1
      %s20 = ssub.s32 %s12, %s19
      %p21 = scmp.eq.s32.totalorder %s20, 0
      %s23 = sadd.s32 %s22, 1
      %s24 = scalar_select %p21, %s22, %s23
      %p27 = pneg %p21
      %p28 = scmp.eq.s32.totalorder %s12, 1
      %p29 = por %p27, %p28
      %p30 = scmp.ne.s32.totalorder %s22, %s25
      %p31 = scmp.eq.s32.totalorder %s12, 0
      %p32 = por %p30, %p31
      %p33 = scmp.ne.s32.totalorder %s22, %s25
      %p34 = scmp.eq.s32.totalorder %s17, 1
      %p35 = por %p33, %p34
      %p36 = scmp.ne.s32.totalorder %s25, %s26
      %p37 = scmp.eq.s32.totalorder %s17, 0
      %p38 = por %p36, %p37
      %p39 = scmp.ne.s32.totalorder %s25, %s26
      %p40 = scmp.eq.s32.totalorder %s18, 1
      %p41 = por %p39, %p40
      %p43 = scmp.ne.s32.totalorder %s26, %s42
      %p44 = scmp.eq.s32.totalorder %s18, 0
      %p45 = por %p43, %p44
      %s47 = sadd.s32 %s46, 1
      %p50 = scmp.eq.s32.totalorder %s12, 1
      %p51 = scmp.ne.s32.totalorder %s46, %s48
      %p52 = scmp.eq.s32.totalorder %s12, 0
      %p53 = por %p51, %p52
      %p54 = scmp.ne.s32.totalorder %s46, %s48
      %p55 = scmp.eq.s32.totalorder %s17, 1
      %p56 = por %p54, %p55
      %p57 = scmp.ne.s32.totalorder %s48, %s49
      %p58 = scmp.eq.s32.totalorder %s17, 0
      %p59 = por %p57, %p58
      %p60 = scmp.ne.s32.totalorder %s48, %s49
      %p61 = scmp.eq.s32.totalorder %s18, 1
      %p62 = por %p60, %p61
      %p64 = scmp.ne.s32.totalorder %s49, %s63
      %p65 = scmp.eq.s32.totalorder %s18, 0
      %p66 = por %p64, %p65
      %s68 = sadd.s32 %s67, 1
      %p71 = scmp.eq.s32.totalorder %s12, 1
      %p72 = scmp.ne.s32.totalorder %s67, %s69
      %p73 = scmp.eq.s32.totalorder %s12, 0
      %p74 = por %p72, %p73
      %p75 = scmp.ne.s32.totalorder %s67, %s69
      %p76 = scmp.eq.s32.totalorder %s17, 1
      %p77 = por %p75, %p76
      %p78 = scmp.ne.s32.totalorder %s69, %s70
      %p79 = scmp.eq.s32.totalorder %s17, 0
      %p80 = por %p78, %p79
      %p81 = scmp.ne.s32.totalorder %s69, %s70
      %p82 = scmp.eq.s32.totalorder %s18, 1
      %p83 = por %p81, %p82
      %p85 = scmp.ne.s32.totalorder %s70, %s84
      %p86 = scmp.eq.s32.totalorder %s18, 0
      %p87 = por %p85, %p86
      %s88 = ssub.s32 %s12, %s19
      %p89 = scmp.eq.s32.totalorder %s88, 0
      %s91 = sadd.s32 %s90, 1
      %s92 = scalar_select %p89, %s90, %s91
      %p95 = pneg %p89
      %p96 = scmp.eq.s32.totalorder %s12, 1
      %p97 = por %p95, %p96
      %p98 = scmp.ne.s32.totalorder %s90, %s93
      %p99 = scmp.eq.s32.totalorder %s12, 0
      %p100 = por %p98, %p99
      %p101 = scmp.ne.s32.totalorder %s90, %s93
      %p102 = scmp.eq.s32.totalorder %s17, 1
      %p103 = por %p101, %p102
      %p104 = scmp.ne.s32.totalorder %s93, %s94
      %p105 = scmp.eq.s32.totalorder %s17, 0
      %p106 = por %p104, %p105
      %p107 = scmp.ne.s32.totalorder %s93, %s94
      %p108 = scmp.eq.s32.totalorder %s18, 1
      %p109 = por %p107, %p108
      %p111 = scmp.ne.s32.totalorder %s94, %s110
      %p112 = scmp.eq.s32.totalorder %s18, 0
      %p113 = por %p111, %p112
      %p114 = scmp.le.s32.totalorder 1, %s12
      %p115 = scmp.lt.s32.totalorder %s12, 3
      %p116 = pnand %p114, %p115
      %p117 = pneg %p116
      // Predicated region
      $region9: #{tpu_custom_call.1} parent=5 // pred_check
        _
      $region10: #{tpu_custom_call.1} parent=5 // pred_check_branch
        %119 = sbr.rel (%p116) target = $region12
      $region11: #{tpu_custom_call.1} parent=5 // pred_region
        %s120 = ssub.s32 %s12, 1
        // Predicated region
        $region13: #{tpu_custom_call.1} parent=11 // pred_check
          %p121 = pneg %p59
        $region14: #{tpu_custom_call.1} parent=11 // pred_check_branch
          %123 = sbr.rel (%p121) target = $region16
        $region15: #{tpu_custom_call.1} parent=11 // pred_region
          _
        $region16: #{tpu_custom_call.1} parent=11 // pred_fallthru
          _
        // Predicated region
        $region17: #{tpu_custom_call.1} parent=11 // pred_check
          %p124 = pneg %p80
        $region18: #{tpu_custom_call.1} parent=11 // pred_check_branch
          %126 = sbr.rel (%p124) target = $region20
        $region19: #{tpu_custom_call.1} parent=11 // pred_region
          _
        $region20: #{tpu_custom_call.1} parent=11 // pred_fallthru
          _
      $region12: #{tpu_custom_call.1} parent=5 // pred_fallthru
        _
      %p127 = scmp.lt.s32.totalorder %s12, 2
      // Predicated region
      $region21: #{tpu_custom_call.1} parent=5 // pred_check
        %p128 = pneg %p127
      $region22: #{tpu_custom_call.1} parent=5 // pred_check_branch
        %130 = sbr.rel (%p128) target = $region24
      $region23: #{tpu_custom_call.1} parent=5 // pred_region
        // Predicated region
        $region25: #{tpu_custom_call.1} parent=23 // pred_check
          %p131 = pneg %p32
        $region26: #{tpu_custom_call.1} parent=23 // pred_check_branch
          %133 = sbr.rel (%p131) target = $region28
        $region27: #{tpu_custom_call.1} parent=23 // pred_region
          %p134 = scmp.lt.s32.totalorder %s12, 1
          %s135 = scalar_select %p134, %s12, 1
          %s136 = smul.addr %s135, 4
          %s137 = smul.addr %s136, 2
          %s138 = scalar_lea.vmem %s0, %s137
        $region28: #{tpu_custom_call.1} parent=23 // pred_fallthru
          _
      $region24: #{tpu_custom_call.1} parent=5 // pred_fallthru
        _
      %p139 = scmp.le.s32.totalorder 1, %s12
      %p140 = scmp.lt.s32.totalorder %s12, 3
      %p141 = pnand %p139, %p140
      %p142 = pneg %p141
      // Predicated region
      $region29: #{tpu_custom_call.1} parent=5 // pred_check
        _
      $region30: #{tpu_custom_call.1} parent=5 // pred_check_branch
        %144 = sbr.rel (%p141) target = $region32
      $region31: #{tpu_custom_call.1} parent=5 // pred_region
        %s145 = ssub.s32 %s12, 1
        %p146 = scmp.lt.s32.totalorder %s17, 1
        %s147 = scalar_select %p146, %s17, 1
        %s148 = smul.addr %s147, 4
        %s149 = smul.addr %s148, 2
        %s150 = scalar_lea.vmem %s0, %s149
        %p151 = pneg %p38
        %p152 = pneg %p35
        %p153 = pneg %p59
        %p154 = pneg %p56
        %p155 = pneg %p80
        %p156 = pneg %p77
        %p157 = pneg %p106
        %p158 = pneg %p103
        %s159 = sand.u32 %s93, 1
        %s160 = scalar_lea.sflag [#allocation3], %s159
        %s161 = sand.u32 %s93, 1
        %s162 = smul.addr %s161, 12
        %s163 = scalar_lea.vmem [#allocation2], %s162
        %p164 = scmp.lt.s32.totalorder %s17, 1
        %s165 = scalar_select %p164, %s17, 1
        %s166 = smul.addr %s165, 4
        %s167 = smul.addr %s166, 2
        %s168 = scalar_lea.vmem %s0, %s167
        %v170 = vld [vmem:[%s2] sm:$0xff]
        %v171 = vld [vmem:[%s168] sm:$0x3f]
        %v172 = vld [vmem:[%s1] sm:$0xf]
        %v173 = vld [vmem:[%s168] sm:$0xff]
        %s174 = scalar_lea.vmem %s1, 4
        %v175 = vld [vmem:[%s174] sm:$0xf]
        %v177 = vcombine.high %v173, %v173
        %v179 = vunpack.c.l.s4 1983009808
        %v180 = vunpack.c.0.s8 %v179
        %v181 = vlaneseq
        %v182 = vshrl.u32 %v181, 7
        %v183 = vsub.s32 %v180, %v182
        %v184 = vrot.slane %v173, %v183
        %v186 = vunpack.c.l.s4 1983009808
        %v187 = vunpack.c.0.s8 %v186
        %v188 = vlaneseq
        %v189 = vshrl.u32 %v188, 7
        %v190 = vsub.s32 %v187, %v189
        %v191 = vrot.slane %v177, %v190
        %v192 = vcombine.high %v184, %v184
        %v193 = vcombine.high %v191, %v191
        %194 = vrot.lane.b32.xlu0 %v184, 127
        %v195 = vpop.permute.xlu0 %194
        %196 = vrot.lane.b32.xlu0 %v192, 127
        %v197 = vpop.permute.xlu0 %196
        %198 = vrot.lane.b32.xlu0 %v191, 127
        %v199 = vpop.permute.xlu0 %198
        %200 = vrot.lane.b32.xlu0 %v193, 127
        %v201 = vpop.permute.xlu0 %200
        %vm202 = vcmask 1039360
        %v203 = vsel %vm202, %v195, %v197
        %v204 = vsel %vm202, %v197, %v199
        %v205 = vsel %vm202, %v199, %v201
        %vm206 = vcmask 31744
        %v208 = vsel %vm206, %v175, 0
        %vm210 = vcmask 1041408
        %v212 = vsel %vm210, %v203, 0
        %v215 = vsel %vm210, %v204, 0
        %v218 = vsel %vm210, %v205, 0
        %220 = vmatprep.subr.bf16.mxu0 %v215
        %221 = vmatpush1.bf16.msra.mxu0 %v212
        %222 = vmatprep.subr.bf16.mxu0 0
        %223 = vmatpush1.bf16.msra.mxu0 0
        %224 = vmatprep.subr.bf16.mxu0 0
        %225 = vmatpush1.bf16.msra.mxu0 0
        %226 = vmatprep.subr.bf16.mxu0 0
        %227 = vmatpush1.bf16.msra.mxu0 0
        %228 = vmatprep.subr.bf16.mxu0 0
        %229 = vmatpush1.bf16.msra.mxu0 0
        %230 = vmatprep.subr.bf16.mxu0 0
        %231 = vmatpush1.bf16.msra.mxu0 0
        %232 = vmatprep.subr.bf16.mxu0 0
        %233 = vmatpush1.bf16.msra.mxu0 0
        %234 = vmatprep.subr.bf16.mxu0 0
        %235 = vmatpush1.bf16.msra.mxu0 0
        %236 = vmatprep.subr.bf16.mxu0 0
        %237 = vmatpush1.bf16.msra.mxu0 0
        %238 = vmatprep.subr.bf16.mxu0 0
        %239 = vmatpush1.bf16.msra.mxu0 0
        %240 = vmatprep.subr.bf16.mxu0 0
        %241 = vmatpush1.bf16.msra.mxu0 0
        %242 = vmatprep.subr.bf16.mxu0 0
        %243 = vmatpush1.bf16.msra.mxu0 0
        %244 = vmatprep.subr.bf16.mxu0 0
        %245 = vmatpush1.bf16.msra.mxu0 0
        %246 = vmatprep.subr.bf16.mxu0 0
        %247 = vmatpush1.bf16.msra.mxu0 0
        %248 = vmatprep.subr.bf16.mxu0 0
        %249 = vmatpush1.bf16.msra.mxu0 0
        %250 = vmatprep.subr.bf16.mxu0 0
        %251 = vmatpush1.bf16.msra.mxu0 0
        %252 = vmatprep.mubr.bf16.mxu0 0
        %253 = vmatmul.mubr.bf16.gmra.mrb[0].mxu0 %v208
        %v254 = vpop.f32.mrb[0].mxu0
        %v255 = vadd.f32 0.0, %v254
        %v256 = vpop.f32.mrb[0].mxu0
        %v257 = vadd.f32 0.0, %v256
        %v258 = vpop.f32.mrb[0].mxu0
        %v259 = vpop.f32.mrb[0].mxu0
        %260 = vdwg.mxu0
        %261 = vmatprep.subr.bf16.mxu0 0
        %262 = vmatpush1.bf16.msra.mxu0 %v218
        %263 = vmatprep.subr.bf16.mxu0 0
        %264 = vmatpush1.bf16.msra.mxu0 0
        %265 = vmatprep.subr.bf16.mxu0 0
        %266 = vmatpush1.bf16.msra.mxu0 0
        %267 = vmatprep.subr.bf16.mxu0 0
        %268 = vmatpush1.bf16.msra.mxu0 0
        %269 = vmatprep.subr.bf16.mxu0 0
        %270 = vmatpush1.bf16.msra.mxu0 0
        %271 = vmatprep.subr.bf16.mxu0 0
        %272 = vmatpush1.bf16.msra.mxu0 0
        %273 = vmatprep.subr.bf16.mxu0 0
        %274 = vmatpush1.bf16.msra.mxu0 0
        %275 = vmatprep.subr.bf16.mxu0 0
        %276 = vmatpush1.bf16.msra.mxu0 0
        %277 = vmatprep.subr.bf16.mxu0 0
        %278 = vmatpush1.bf16.msra.mxu0 0
        %279 = vmatprep.subr.bf16.mxu0 0
        %280 = vmatpush1.bf16.msra.mxu0 0
        %281 = vmatprep.subr.bf16.mxu0 0
        %282 = vmatpush1.bf16.msra.mxu0 0
        %283 = vmatprep.subr.bf16.mxu0 0
        %284 = vmatpush1.bf16.msra.mxu0 0
        %285 = vmatprep.subr.bf16.mxu0 0
        %286 = vmatpush1.bf16.msra.mxu0 0
        %287 = vmatprep.subr.bf16.mxu0 0
        %288 = vmatpush1.bf16.msra.mxu0 0
        %289 = vmatprep.subr.bf16.mxu0 0
        %290 = vmatpush1.bf16.msra.mxu0 0
        %291 = vmatprep.subr.bf16.mxu0 0
        %292 = vmatpush1.bf16.msra.mxu0 0
        %293 = vmatprep.mubr.bf16.mxu0 0
        %294 = vmatmul.mubr.bf16.gmra.mrb[0].mxu0 %v208
        %v295 = vpop.f32.mrb[0].mxu0
        %v296 = vadd.f32 0.0, %v295
        %v297 = vpop.f32.mrb[0].mxu0
        %v298 = vpop.f32.mrb[0].mxu0
        %v299 = vpop.f32.mrb[0].mxu0
        %300 = vdwg.mxu0
        %v302 = vcombine.high %v171, %v171
        %v304 = vunpack.c.l.s4 1983009808
        %v305 = vunpack.c.0.s8 %v304
        %v306 = vlaneseq
        %v307 = vshrl.u32 %v306, 7
        %v308 = vsub.s32 %v305, %v307
        %v309 = vrot.slane %v171, %v308
        %v311 = vunpack.c.l.s4 1983009808
        %v312 = vunpack.c.0.s8 %v311
        %v313 = vlaneseq
        %v314 = vshrl.u32 %v313, 7
        %v315 = vsub.s32 %v312, %v314
        %v316 = vrot.slane %v302, %v315
        %v317 = vcombine.high %v309, %v309
        %v319 = vsel %vm206, %v172, 0
        %v322 = vsel %vm210, %v309, 0
        %v325 = vsel %vm210, %v317, 0
        %v328 = vsel %vm210, %v316, 0
        %330 = vmatprep.subr.bf16.mxu0 %v325
        %331 = vmatpush1.bf16.msra.mxu0 %v322
        %332 = vmatprep.subr.bf16.mxu0 0
        %333 = vmatpush1.bf16.msra.mxu0 0
        %334 = vmatprep.subr.bf16.mxu0 0
        %335 = vmatpush1.bf16.msra.mxu0 0
        %336 = vmatprep.subr.bf16.mxu0 0
        %337 = vmatpush1.bf16.msra.mxu0 0
        %338 = vmatprep.subr.bf16.mxu0 0
        %339 = vmatpush1.bf16.msra.mxu0 0
        %340 = vmatprep.subr.bf16.mxu0 0
        %341 = vmatpush1.bf16.msra.mxu0 0
        %342 = vmatprep.subr.bf16.mxu0 0
        %343 = vmatpush1.bf16.msra.mxu0 0
        %344 = vmatprep.subr.bf16.mxu0 0
        %345 = vmatpush1.bf16.msra.mxu0 0
        %346 = vmatprep.subr.bf16.mxu0 0
        %347 = vmatpush1.bf16.msra.mxu0 0
        %348 = vmatprep.subr.bf16.mxu0 0
        %349 = vmatpush1.bf16.msra.mxu0 0
        %350 = vmatprep.subr.bf16.mxu0 0
        %351 = vmatpush1.bf16.msra.mxu0 0
        %352 = vmatprep.subr.bf16.mxu0 0
        %353 = vmatpush1.bf16.msra.mxu0 0
        %354 = vmatprep.subr.bf16.mxu0 0
        %355 = vmatpush1.bf16.msra.mxu0 0
        %356 = vmatprep.subr.bf16.mxu0 0
        %357 = vmatpush1.bf16.msra.mxu0 0
        %358 = vmatprep.subr.bf16.mxu0 0
        %359 = vmatpush1.bf16.msra.mxu0 0
        %360 = vmatprep.subr.bf16.mxu0 0
        %361 = vmatpush1.bf16.msra.mxu0 0
        %362 = vmatprep.mubr.bf16.mxu0 0
        %363 = vmatmul.mubr.bf16.gmra.mrb[0].mxu0 %v319
        %v364 = vpop.f32.mrb[0].mxu0
        %v365 = vadd.f32 %v255, %v364
        %v366 = vpop.f32.mrb[0].mxu0
        %v367 = vadd.f32 %v257, %v366
        %v368 = vpop.f32.mrb[0].mxu0
        %v369 = vpop.f32.mrb[0].mxu0
        %370 = vdwg.mxu0
        %371 = vmatprep.subr.bf16.mxu0 0
        %372 = vmatpush1.bf16.msra.mxu0 %v328
        %373 = vmatprep.subr.bf16.mxu0 0
        %374 = vmatpush1.bf16.msra.mxu0 0
        %375 = vmatprep.subr.bf16.mxu0 0
        %376 = vmatpush1.bf16.msra.mxu0 0
        %377 = vmatprep.subr.bf16.mxu0 0
        %378 = vmatpush1.bf16.msra.mxu0 0
        %379 = vmatprep.subr.bf16.mxu0 0
        %380 = vmatpush1.bf16.msra.mxu0 0
        %381 = vmatprep.subr.bf16.mxu0 0
        %382 = vmatpush1.bf16.msra.mxu0 0
        %383 = vmatprep.subr.bf16.mxu0 0
        %384 = vmatpush1.bf16.msra.mxu0 0
        %385 = vmatprep.subr.bf16.mxu0 0
        %386 = vmatpush1.bf16.msra.mxu0 0
        %387 = vmatprep.subr.bf16.mxu0 0
        %388 = vmatpush1.bf16.msra.mxu0 0
        %389 = vmatprep.subr.bf16.mxu0 0
        %390 = vmatpush1.bf16.msra.mxu0 0
        %391 = vmatprep.subr.bf16.mxu0 0
        %392 = vmatpush1.bf16.msra.mxu0 0
        %393 = vmatprep.subr.bf16.mxu0 0
        %394 = vmatpush1.bf16.msra.mxu0 0
        %395 = vmatprep.subr.bf16.mxu0 0
        %396 = vmatpush1.bf16.msra.mxu0 0
        %397 = vmatprep.subr.bf16.mxu0 0
        %398 = vmatpush1.bf16.msra.mxu0 0
        %399 = vmatprep.subr.bf16.mxu0 0
        %400 = vmatpush1.bf16.msra.mxu0 0
        %401 = vmatprep.subr.bf16.mxu0 0
        %402 = vmatpush1.bf16.msra.mxu0 0
        %403 = vmatprep.mubr.bf16.mxu0 0
        %404 = vmatmul.mubr.bf16.gmra.mrb[0].mxu0 %v319
        %v405 = vpop.f32.mrb[0].mxu0
        %v406 = vadd.f32 %v296, %v405
        %v407 = vpop.f32.mrb[0].mxu0
        %v408 = vpop.f32.mrb[0].mxu0
        %v409 = vpop.f32.mrb[0].mxu0
        %410 = vdwg.mxu0
        %v411 = vld [vmem:[%s168] sm:$0xff]
        %s412 = scalar_lea.vmem %s1, 8
        %v413 = vld [vmem:[%s412] sm:$0xf]
        %v415 = vcombine.high %v411, %v411
        %v417 = vunpack.c.l.s4 1983009808
        %v418 = vunpack.c.0.s8 %v417
        %v419 = vlaneseq
        %v420 = vshrl.u32 %v419, 7
        %v421 = vsub.s32 %v418, %v420
        %v422 = vrot.slane %v411, %v421
        %v424 = vunpack.c.l.s4 1983009808
        %v425 = vunpack.c.0.s8 %v424
        %v426 = vlaneseq
        %v427 = vshrl.u32 %v426, 7
        %v428 = vsub.s32 %v425, %v427
        %v429 = vrot.slane %v415, %v428
        %v430 = vcombine.high %v422, %v422
        %v431 = vcombine.high %v429, %v429
        %432 = vrot.lane.b32.xlu0 %v422, 126
        %v433 = vpop.permute.xlu0 %432
        %434 = vrot.lane.b32.xlu0 %v430, 126
        %v435 = vpop.permute.xlu0 %434
        %436 = vrot.lane.b32.xlu0 %v429, 126
        %v437 = vpop.permute.xlu0 %436
        %438 = vrot.lane.b32.xlu0 %v431, 126
        %v439 = vpop.permute.xlu0 %438
        %vm440 = vcmask 1031168
        %v441 = vsel %vm440, %v433, %v435
        %v442 = vsel %vm440, %v435, %v437
        %v443 = vsel %vm440, %v437, %v439
        %v445 = vsel %vm206, %v413, 0
        %v448 = vsel %vm210, %v441, 0
        %v451 = vsel %vm210, %v442, 0
        %v454 = vsel %vm210, %v443, 0
        %456 = vmatprep.subr.bf16.mxu0 %v451
        %457 = vmatpush1.bf16.msra.mxu0 %v448
        %458 = vmatprep.subr.bf16.mxu0 0
        %459 = vmatpush1.bf16.msra.mxu0 0
        %460 = vmatprep.subr.bf16.mxu0 0
        %461 = vmatpush1.bf16.msra.mxu0 0
        %462 = vmatprep.subr.bf16.mxu0 0
        %463 = vmatpush1.bf16.msra.mxu0 0
        %464 = vmatprep.subr.bf16.mxu0 0
        %465 = vmatpush1.bf16.msra.mxu0 0
        %466 = vmatprep.subr.bf16.mxu0 0
        %467 = vmatpush1.bf16.msra.mxu0 0
        %468 = vmatprep.subr.bf16.mxu0 0
        %469 = vmatpush1.bf16.msra.mxu0 0
        %470 = vmatprep.subr.bf16.mxu0 0
        %471 = vmatpush1.bf16.msra.mxu0 0
        %472 = vmatprep.subr.bf16.mxu0 0
        %473 = vmatpush1.bf16.msra.mxu0 0
        %474 = vmatprep.subr.bf16.mxu0 0
        %475 = vmatpush1.bf16.msra.mxu0 0
        %476 = vmatprep.subr.bf16.mxu0 0
        %477 = vmatpush1.bf16.msra.mxu0 0
        %478 = vmatprep.subr.bf16.mxu0 0
        %479 = vmatpush1.bf16.msra.mxu0 0
        %480 = vmatprep.subr.bf16.mxu0 0
        %481 = vmatpush1.bf16.msra.mxu0 0
        %482 = vmatprep.subr.bf16.mxu0 0
        %483 = vmatpush1.bf16.msra.mxu0 0
        %484 = vmatprep.subr.bf16.mxu0 0
        %485 = vmatpush1.bf16.msra.mxu0 0
        %486 = vmatprep.subr.bf16.mxu0 0
        %487 = vmatpush1.bf16.msra.mxu0 0
        %488 = vmatprep.mubr.bf16.mxu0 0
        %489 = vmatmul.mubr.bf16.gmra.mrb[0].mxu0 %v445
        %v490 = vpop.f32.mrb[0].mxu0
        %v491 = vadd.f32 0.0, %v490
        %v492 = vpop.f32.mrb[0].mxu0
        %v493 = vadd.f32 0.0, %v492
        %v494 = vpop.f32.mrb[0].mxu0
        %v495 = vpop.f32.mrb[0].mxu0
        %496 = vdwg.mxu0
        %497 = vmatprep.subr.bf16.mxu0 0
        %498 = vmatpush1.bf16.msra.mxu0 %v454
        %499 = vmatprep.subr.bf16.mxu0 0
        %500 = vmatpush1.bf16.msra.mxu0 0
        %501 = vmatprep.subr.bf16.mxu0 0
        %502 = vmatpush1.bf16.msra.mxu0 0
        %503 = vmatprep.subr.bf16.mxu0 0
        %504 = vmatpush1.bf16.msra.mxu0 0
        %505 = vmatprep.subr.bf16.mxu0 0
        %506 = vmatpush1.bf16.msra.mxu0 0
        %507 = vmatprep.subr.bf16.mxu0 0
        %508 = vmatpush1.bf16.msra.mxu0 0
        %509 = vmatprep.subr.bf16.mxu0 0
        %510 = vmatpush1.bf16.msra.mxu0 0
        %511 = vmatprep.subr.bf16.mxu0 0
        %512 = vmatpush1.bf16.msra.mxu0 0
        %513 = vmatprep.subr.bf16.mxu0 0
        %514 = vmatpush1.bf16.msra.mxu0 0
        %515 = vmatprep.subr.bf16.mxu0 0
        %516 = vmatpush1.bf16.msra.mxu0 0
        %517 = vmatprep.subr.bf16.mxu0 0
        %518 = vmatpush1.bf16.msra.mxu0 0
        %519 = vmatprep.subr.bf16.mxu0 0
        %520 = vmatpush1.bf16.msra.mxu0 0
        %521 = vmatprep.subr.bf16.mxu0 0
        %522 = vmatpush1.bf16.msra.mxu0 0
        %523 = vmatprep.subr.bf16.mxu0 0
        %524 = vmatpush1.bf16.msra.mxu0 0
        %525 = vmatprep.subr.bf16.mxu0 0
        %526 = vmatpush1.bf16.msra.mxu0 0
        %527 = vmatprep.subr.bf16.mxu0 0
        %528 = vmatpush1.bf16.msra.mxu0 0
        %529 = vmatprep.mubr.bf16.mxu0 0
        %530 = vmatmul.mubr.bf16.gmra.mrb[0].mxu0 %v445
        %v531 = vpop.f32.mrb[0].mxu0
        %v532 = vadd.f32 0.0, %v531
        %v533 = vpop.f32.mrb[0].mxu0
        %v534 = vpop.f32.mrb[0].mxu0
        %v535 = vpop.f32.mrb[0].mxu0
        %536 = vdwg.mxu0
        %v537 = vadd.f32 %v365, %v491
        %v538 = vadd.f32 %v367, %v493
        %v539 = vadd.f32 %v406, %v532
        %v540 = vld [vmem:[%s168] sm:$0xff]
        %s541 = scalar_lea.vmem %s1, 12
        %v542 = vld [vmem:[%s541] sm:$0xf]
        %v544 = vcombine.high %v540, %v540
        %v546 = vunpack.c.l.s4 1983009808
        %v547 = vunpack.c.0.s8 %v546
        %v548 = vlaneseq
        %v549 = vshrl.u32 %v548, 7
        %v550 = vsub.s32 %v547, %v549
        %v551 = vrot.slane %v540, %v550
        %v553 = vunpack.c.l.s4 1983009808
        %v554 = vunpack.c.0.s8 %v553
        %v555 = vlaneseq
        %v556 = vshrl.u32 %v555, 7
        %v557 = vsub.s32 %v554, %v556
        %v558 = vrot.slane %v544, %v557
        %v559 = vcombine.high %v551, %v551
        %v560 = vcombine.high %v558, %v558
        %561 = vrot.lane.b32.xlu0 %v551, 110
        %v562 = vpop.permute.xlu0 %561
        %563 = vrot.lane.b32.xlu0 %v559, 110
        %v564 = vpop.permute.xlu0 %563
        %565 = vrot.lane.b32.xlu0 %v558, 110
        %v566 = vpop.permute.xlu0 %565
        %567 = vrot.lane.b32.xlu0 %v560, 110
        %v568 = vpop.permute.xlu0 %567
        %vm569 = vcmask 900096
        %v570 = vsel %vm569, %v562, %v564
        %v571 = vsel %vm569, %v564, %v566
        %v572 = vsel %vm569, %v566, %v568
        %v574 = vsel %vm206, %v542, 0
        %v577 = vsel %vm210, %v570, 0
        %v580 = vsel %vm210, %v571, 0
        %v583 = vsel %vm210, %v572, 0
        %585 = vmatprep.subr.bf16.mxu0 %v580
        %586 = vmatpush1.bf16.msra.mxu0 %v577
        %587 = vmatprep.subr.bf16.mxu0 0
        %588 = vmatpush1.bf16.msra.mxu0 0
        %589 = vmatprep.subr.bf16.mxu0 0
        %590 = vmatpush1.bf16.msra.mxu0 0
        %591 = vmatprep.subr.bf16.mxu0 0
        %592 = vmatpush1.bf16.msra.mxu0 0
        %593 = vmatprep.subr.bf16.mxu0 0
        %594 = vmatpush1.bf16.msra.mxu0 0
        %595 = vmatprep.subr.bf16.mxu0 0
        %596 = vmatpush1.bf16.msra.mxu0 0
        %597 = vmatprep.subr.bf16.mxu0 0
        %598 = vmatpush1.bf16.msra.mxu0 0
        %599 = vmatprep.subr.bf16.mxu0 0
        %600 = vmatpush1.bf16.msra.mxu0 0
        %601 = vmatprep.subr.bf16.mxu0 0
        %602 = vmatpush1.bf16.msra.mxu0 0
        %603 = vmatprep.subr.bf16.mxu0 0
        %604 = vmatpush1.bf16.msra.mxu0 0
        %605 = vmatprep.subr.bf16.mxu0 0
        %606 = vmatpush1.bf16.msra.mxu0 0
        %607 = vmatprep.subr.bf16.mxu0 0
        %608 = vmatpush1.bf16.msra.mxu0 0
        %609 = vmatprep.subr.bf16.mxu0 0
        %610 = vmatpush1.bf16.msra.mxu0 0
        %611 = vmatprep.subr.bf16.mxu0 0
        %612 = vmatpush1.bf16.msra.mxu0 0
        %613 = vmatprep.subr.bf16.mxu0 0
        %614 = vmatpush1.bf16.msra.mxu0 0
        %615 = vmatprep.subr.bf16.mxu0 0
        %616 = vmatpush1.bf16.msra.mxu0 0
        %617 = vmatprep.mubr.bf16.mxu0 0
        %618 = vmatmul.mubr.bf16.gmra.mrb[0].mxu0 %v574
        %v619 = vpop.f32.mrb[0].mxu0
        %v620 = vadd.f32 0.0, %v619
        %v621 = vpop.f32.mrb[0].mxu0
        %v622 = vadd.f32 0.0, %v621
        %v623 = vpop.f32.mrb[0].mxu0
        %v624 = vpop.f32.mrb[0].mxu0
        %625 = vdwg.mxu0
        %626 = vmatprep.subr.bf16.mxu0 0
        %627 = vmatpush1.bf16.msra.mxu0 %v583
        %628 = vmatprep.subr.bf16.mxu0 0
        %629 = vmatpush1.bf16.msra.mxu0 0
        %630 = vmatprep.subr.bf16.mxu0 0
        %631 = vmatpush1.bf16.msra.mxu0 0
        %632 = vmatprep.subr.bf16.mxu0 0
        %633 = vmatpush1.bf16.msra.mxu0 0
        %634 = vmatprep.subr.bf16.mxu0 0
        %635 = vmatpush1.bf16.msra.mxu0 0
        %636 = vmatprep.subr.bf16.mxu0 0
        %637 = vmatpush1.bf16.msra.mxu0 0
        %638 = vmatprep.subr.bf16.mxu0 0
        %639 = vmatpush1.bf16.msra.mxu0 0
        %640 = vmatprep.subr.bf16.mxu0 0
        %641 = vmatpush1.bf16.msra.mxu0 0
        %642 = vmatprep.subr.bf16.mxu0 0
        %643 = vmatpush1.bf16.msra.mxu0 0
        %644 = vmatprep.subr.bf16.mxu0 0
        %645 = vmatpush1.bf16.msra.mxu0 0
        %646 = vmatprep.subr.bf16.mxu0 0
        %647 = vmatpush1.bf16.msra.mxu0 0
        %648 = vmatprep.subr.bf16.mxu0 0
        %649 = vmatpush1.bf16.msra.mxu0 0
        %650 = vmatprep.subr.bf16.mxu0 0
        %651 = vmatpush1.bf16.msra.mxu0 0
        %652 = vmatprep.subr.bf16.mxu0 0
        %653 = vmatpush1.bf16.msra.mxu0 0
        %654 = vmatprep.subr.bf16.mxu0 0
        %655 = vmatpush1.bf16.msra.mxu0 0
        %656 = vmatprep.subr.bf16.mxu0 0
        %657 = vmatpush1.bf16.msra.mxu0 0
        %658 = vmatprep.mubr.bf16.mxu0 0
        %659 = vmatmul.mubr.bf16.gmra.mrb[0].mxu0 %v574
        %v660 = vpop.f32.mrb[0].mxu0
        %v661 = vadd.f32 0.0, %v660
        %v662 = vpop.f32.mrb[0].mxu0
        %v663 = vpop.f32.mrb[0].mxu0
        %v664 = vpop.f32.mrb[0].mxu0
        %665 = vdwg.mxu0
        %v666 = vadd.f32 %v537, %v620
        %v667 = vadd.f32 %v538, %v622
        %v668 = vadd.f32 %v539, %v661
        %v669 = vld [vmem:[%s168] sm:$0xff]
        %s670 = scalar_lea.vmem %s1, 16
        %v671 = vld [vmem:[%s670] sm:$0xf]
        %v673 = vcombine.high %v669, %v669
        %v675 = vunpack.c.l.s4 1983009808
        %v676 = vunpack.c.0.s8 %v675
        %v677 = vlaneseq
        %v678 = vshrl.u32 %v677, 7
        %v679 = vsub.s32 %v676, %v678
        %v680 = vrot.slane %v669, %v679
        %v682 = vunpack.c.l.s4 1983009808
        %v683 = vunpack.c.0.s8 %v682
        %v684 = vlaneseq
        %v685 = vshrl.u32 %v684, 7
        %v686 = vsub.s32 %v683, %v685
        %v687 = vrot.slane %v673, %v686
        %v688 = vcombine.high %v680, %v680
        %v689 = vcombine.high %v687, %v687
        %690 = vrot.lane.b32.xlu0 %v680, 109
        %v691 = vpop.permute.xlu0 %690
        %692 = vrot.lane.b32.xlu0 %v688, 109
        %v693 = vpop.permute.xlu0 %692
        %694 = vrot.lane.b32.xlu0 %v687, 109
        %v695 = vpop.permute.xlu0 %694
        %696 = vrot.lane.b32.xlu0 %v689, 109
        %v697 = vpop.permute.xlu0 %696
        %vm698 = vcmask 891904
        %v699 = vsel %vm698, %v691, %v693
        %v700 = vsel %vm698, %v693, %v695
        %v701 = vsel %vm698, %v695, %v697
        %v703 = vsel %vm206, %v671, 0
        %v706 = vsel %vm210, %v699, 0
        %v709 = vsel %vm210, %v700, 0
        %v712 = vsel %vm210, %v701, 0
        %714 = vmatprep.subr.bf16.mxu0 %v709
        %715 = vmatpush1.bf16.msra.mxu0 %v706
        %716 = vmatprep.subr.bf16.mxu0 0
        %717 = vmatpush1.bf16.msra.mxu0 0
        %718 = vmatprep.subr.bf16.mxu0 0
        %719 = vmatpush1.bf16.msra.mxu0 0
        %720 = vmatprep.subr.bf16.mxu0 0
        %721 = vmatpush1.bf16.msra.mxu0 0
        %722 = vmatprep.subr.bf16.mxu0 0
        %723 = vmatpush1.bf16.msra.mxu0 0
        %724 = vmatprep.subr.bf16.mxu0 0
        %725 = vmatpush1.bf16.msra.mxu0 0
        %726 = vmatprep.subr.bf16.mxu0 0
        %727 = vmatpush1.bf16.msra.mxu0 0
        %728 = vmatprep.subr.bf16.mxu0 0
        %729 = vmatpush1.bf16.msra.mxu0 0
        %730 = vmatprep.subr.bf16.mxu0 0
        %731 = vmatpush1.bf16.msra.mxu0 0
        %732 = vmatprep.subr.bf16.mxu0 0
        %733 = vmatpush1.bf16.msra.mxu0 0
        %734 = vmatprep.subr.bf16.mxu0 0
        %735 = vmatpush1.bf16.msra.mxu0 0
        %736 = vmatprep.subr.bf16.mxu0 0
        %737 = vmatpush1.bf16.msra.mxu0 0
        %738 = vmatprep.subr.bf16.mxu0 0
        %739 = vmatpush1.bf16.msra.mxu0 0
        %740 = vmatprep.subr.bf16.mxu0 0
        %741 = vmatpush1.bf16.msra.mxu0 0
        %742 = vmatprep.subr.bf16.mxu0 0
        %743 = vmatpush1.bf16.msra.mxu0 0
        %744 = vmatprep.subr.bf16.mxu0 0
        %745 = vmatpush1.bf16.msra.mxu0 0
        %746 = vmatprep.mubr.bf16.mxu0 0
        %747 = vmatmul.mubr.bf16.gmra.mrb[0].mxu0 %v703
        %v748 = vpop.f32.mrb[0].mxu0
        %v749 = vadd.f32 0.0, %v748
        %v750 = vpop.f32.mrb[0].mxu0
        %v751 = vadd.f32 0.0, %v750
        %v752 = vpop.f32.mrb[0].mxu0
        %v753 = vpop.f32.mrb[0].mxu0
        %754 = vdwg.mxu0
        %755 = vmatprep.subr.bf16.mxu0 0
        %756 = vmatpush1.bf16.msra.mxu0 %v712
        %757 = vmatprep.subr.bf16.mxu0 0
        %758 = vmatpush1.bf16.msra.mxu0 0
        %759 = vmatprep.subr.bf16.mxu0 0
        %760 = vmatpush1.bf16.msra.mxu0 0
        %761 = vmatprep.subr.bf16.mxu0 0
        %762 = vmatpush1.bf16.msra.mxu0 0
        %763 = vmatprep.subr.bf16.mxu0 0
        %764 = vmatpush1.bf16.msra.mxu0 0
        %765 = vmatprep.subr.bf16.mxu0 0
        %766 = vmatpush1.bf16.msra.mxu0 0
        %767 = vmatprep.subr.bf16.mxu0 0
        %768 = vmatpush1.bf16.msra.mxu0 0
        %769 = vmatprep.subr.bf16.mxu0 0
        %770 = vmatpush1.bf16.msra.mxu0 0
        %771 = vmatprep.subr.bf16.mxu0 0
        %772 = vmatpush1.bf16.msra.mxu0 0
        %773 = vmatprep.subr.bf16.mxu0 0
        %774 = vmatpush1.bf16.msra.mxu0 0
        %775 = vmatprep.subr.bf16.mxu0 0
        %776 = vmatpush1.bf16.msra.mxu0 0
        %777 = vmatprep.subr.bf16.mxu0 0
        %778 = vmatpush1.bf16.msra.mxu0 0
        %779 = vmatprep.subr.bf16.mxu0 0
        %780 = vmatpush1.bf16.msra.mxu0 0
        %781 = vmatprep.subr.bf16.mxu0 0
        %782 = vmatpush1.bf16.msra.mxu0 0
        %783 = vmatprep.subr.bf16.mxu0 0
        %784 = vmatpush1.bf16.msra.mxu0 0
        %785 = vmatprep.subr.bf16.mxu0 0
        %786 = vmatpush1.bf16.msra.mxu0 0
        %787 = vmatprep.mubr.bf16.mxu0 0
        %788 = vmatmul.mubr.bf16.gmra.mrb[0].mxu0 %v703
        %v789 = vpop.f32.mrb[0].mxu0
        %v790 = vadd.f32 0.0, %v789
        %v791 = vpop.f32.mrb[0].mxu0
        %v792 = vpop.f32.mrb[0].mxu0
        %v793 = vpop.f32.mrb[0].mxu0
        %794 = vdwg.mxu0
        %v795 = vadd.f32 %v666, %v749
        %v796 = vadd.f32 %v667, %v751
        %v797 = vadd.f32 %v668, %v790
        %v798 = vld [vmem:[%s168] sm:$0xff]
        %s799 = scalar_lea.vmem %s1, 20
        %v800 = vld [vmem:[%s799] sm:$0xf]
        %v802 = vcombine.high %v798, %v798
        %v804 = vunpack.c.l.s4 1983009808
        %v805 = vunpack.c.0.s8 %v804
        %v806 = vlaneseq
        %v807 = vshrl.u32 %v806, 7
        %v808 = vsub.s32 %v805, %v807
        %v809 = vrot.slane %v798, %v808
        %v811 = vunpack.c.l.s4 1983009808
        %v812 = vunpack.c.0.s8 %v811
        %v813 = vlaneseq
        %v814 = vshrl.u32 %v813, 7
        %v815 = vsub.s32 %v812, %v814
        %v816 = vrot.slane %v802, %v815
        %v817 = vcombine.high %v809, %v809
        %v818 = vcombine.high %v816, %v816
        %819 = vrot.lane.b32.xlu0 %v809, 108
        %v820 = vpop.permute.xlu0 %819
        %821 = vrot.lane.b32.xlu0 %v817, 108
        %v822 = vpop.permute.xlu0 %821
        %823 = vrot.lane.b32.xlu0 %v816, 108
        %v824 = vpop.permute.xlu0 %823
        %825 = vrot.lane.b32.xlu0 %v818, 108
        %v826 = vpop.permute.xlu0 %825
        %vm827 = vcmask 883712
        %v828 = vsel %vm827, %v820, %v822
        %v829 = vsel %vm827, %v822, %v824
        %v830 = vsel %vm827, %v824, %v826
        %v832 = vsel %vm206, %v800, 0
        %v835 = vsel %vm210, %v828, 0
        %v838 = vsel %vm210, %v829, 0
        %v841 = vsel %vm210, %v830, 0
        %843 = vmatprep.subr.bf16.mxu0 %v838
        %844 = vmatpush1.bf16.msra.mxu0 %v835
        %845 = vmatprep.subr.bf16.mxu0 0
        %846 = vmatpush1.bf16.msra.mxu0 0
        %847 = vmatprep.subr.bf16.mxu0 0
        %848 = vmatpush1.bf16.msra.mxu0 0
        %849 = vmatprep.subr.bf16.mxu0 0
        %850 = vmatpush1.bf16.msra.mxu0 0
        %851 = vmatprep.subr.bf16.mxu0 0
        %852 = vmatpush1.bf16.msra.mxu0 0
        %853 = vmatprep.subr.bf16.mxu0 0
        %854 = vmatpush1.bf16.msra.mxu0 0
        %855 = vmatprep.subr.bf16.mxu0 0
        %856 = vmatpush1.bf16.msra.mxu0 0
        %857 = vmatprep.subr.bf16.mxu0 0
        %858 = vmatpush1.bf16.msra.mxu0 0
        %859 = vmatprep.subr.bf16.mxu0 0
        %860 = vmatpush1.bf16.msra.mxu0 0
        %861 = vmatprep.subr.bf16.mxu0 0
        %862 = vmatpush1.bf16.msra.mxu0 0
        %863 = vmatprep.subr.bf16.mxu0 0
        %864 = vmatpush1.bf16.msra.mxu0 0
        %865 = vmatprep.subr.bf16.mxu0 0
        %866 = vmatpush1.bf16.msra.mxu0 0
        %867 = vmatprep.subr.bf16.mxu0 0
        %868 = vmatpush1.bf16.msra.mxu0 0
        %869 = vmatprep.subr.bf16.mxu0 0
        %870 = vmatpush1.bf16.msra.mxu0 0
        %871 = vmatprep.subr.bf16.mxu0 0
        %872 = vmatpush1.bf16.msra.mxu0 0
        %873 = vmatprep.subr.bf16.mxu0 0
        %874 = vmatpush1.bf16.msra.mxu0 0
        %875 = vmatprep.mubr.bf16.mxu0 0
        %876 = vmatmul.mubr.bf16.gmra.mrb[0].mxu0 %v832
        %v877 = vpop.f32.mrb[0].mxu0
        %v878 = vadd.f32 0.0, %v877
        %v879 = vpop.f32.mrb[0].mxu0
        %v880 = vadd.f32 0.0, %v879
        %v881 = vpop.f32.mrb[0].mxu0
        %v882 = vpop.f32.mrb[0].mxu0
        %883 = vdwg.mxu0
        %884 = vmatprep.subr.bf16.mxu0 0
        %885 = vmatpush1.bf16.msra.mxu0 %v841
        %886 = vmatprep.subr.bf16.mxu0 0
        %887 = vmatpush1.bf16.msra.mxu0 0
        %888 = vmatprep.subr.bf16.mxu0 0
        %889 = vmatpush1.bf16.msra.mxu0 0
        %890 = vmatprep.subr.bf16.mxu0 0
        %891 = vmatpush1.bf16.msra.mxu0 0
        %892 = vmatprep.subr.bf16.mxu0 0
        %893 = vmatpush1.bf16.msra.mxu0 0
        %894 = vmatprep.subr.bf16.mxu0 0
        %895 = vmatpush1.bf16.msra.mxu0 0
        %896 = vmatprep.subr.bf16.mxu0 0
        %897 = vmatpush1.bf16.msra.mxu0 0
        %898 = vmatprep.subr.bf16.mxu0 0
        %899 = vmatpush1.bf16.msra.mxu0 0
        %900 = vmatprep.subr.bf16.mxu0 0
        %901 = vmatpush1.bf16.msra.mxu0 0
        %902 = vmatprep.subr.bf16.mxu0 0
        %903 = vmatpush1.bf16.msra.mxu0 0
        %904 = vmatprep.subr.bf16.mxu0 0
        %905 = vmatpush1.bf16.msra.mxu0 0
        %906 = vmatprep.subr.bf16.mxu0 0
        %907 = vmatpush1.bf16.msra.mxu0 0
        %908 = vmatprep.subr.bf16.mxu0 0
        %909 = vmatpush1.bf16.msra.mxu0 0
        %910 = vmatprep.subr.bf16.mxu0 0
        %911 = vmatpush1.bf16.msra.mxu0 0
        %912 = vmatprep.subr.bf16.mxu0 0
        %913 = vmatpush1.bf16.msra.mxu0 0
        %914 = vmatprep.subr.bf16.mxu0 0
        %915 = vmatpush1.bf16.msra.mxu0 0
        %916 = vmatprep.mubr.bf16.mxu0 0
        %917 = vmatmul.mubr.bf16.gmra.mrb[0].mxu0 %v832
        %v918 = vpop.f32.mrb[0].mxu0
        %v919 = vadd.f32 0.0, %v918
        %v920 = vpop.f32.mrb[0].mxu0
        %v921 = vpop.f32.mrb[0].mxu0
        %v922 = vpop.f32.mrb[0].mxu0
        %923 = vdwg.mxu0
        %v924 = vadd.f32 %v795, %v878
        %v925 = vadd.f32 %v796, %v880
        %v926 = vadd.f32 %v797, %v919
        %v927 = vld [vmem:[%s168] sm:$0xff]
        %s928 = scalar_lea.vmem %s1, 24
        %v929 = vld [vmem:[%s928] sm:$0xf]
        %v931 = vcombine.high %v927, %v927
        %v933 = vunpack.c.l.s4 1983009808
        %v934 = vunpack.c.0.s8 %v933
        %v935 = vlaneseq
        %v936 = vshrl.u32 %v935, 7
        %v937 = vsub.s32 %v934, %v936
        %v938 = vrot.slane %v927, %v937
        %v940 = vunpack.c.l.s4 1983009808
        %v941 = vunpack.c.0.s8 %v940
        %v942 = vlaneseq
        %v943 = vshrl.u32 %v942, 7
        %v944 = vsub.s32 %v941, %v943
        %v945 = vrot.slane %v931, %v944
        %v946 = vcombine.high %v938, %v938
        %v947 = vcombine.high %v945, %v945
        %948 = vrot.lane.b32.xlu0 %v938, 92
        %v949 = vpop.permute.xlu0 %948
        %950 = vrot.lane.b32.xlu0 %v946, 92
        %v951 = vpop.permute.xlu0 %950
        %952 = vrot.lane.b32.xlu0 %v945, 92
        %v953 = vpop.permute.xlu0 %952
        %954 = vrot.lane.b32.xlu0 %v947, 92
        %v955 = vpop.permute.xlu0 %954
        %vm956 = vcmask 752640
        %v957 = vsel %vm956, %v949, %v951
        %v958 = vsel %vm956, %v951, %v953
        %v959 = vsel %vm956, %v953, %v955
        %v961 = vsel %vm206, %v929, 0
        %v964 = vsel %vm210, %v957, 0
        %v967 = vsel %vm210, %v958, 0
        %v970 = vsel %vm210, %v959, 0
        %972 = vmatprep.subr.bf16.mxu0 %v967
        %973 = vmatpush1.bf16.msra.mxu0 %v964
        %974 = vmatprep.subr.bf16.mxu0 0
        %975 = vmatpush1.bf16.msra.mxu0 0
        %976 = vmatprep.subr.bf16.mxu0 0
        %977 = vmatpush1.bf16.msra.mxu0 0
        %978 = vmatprep.subr.bf16.mxu0 0
        %979 = vmatpush1.bf16.msra.mxu0 0
        %980 = vmatprep.subr.bf16.mxu0 0
        %981 = vmatpush1.bf16.msra.mxu0 0
        %982 = vmatprep.subr.bf16.mxu0 0
        %983 = vmatpush1.bf16.msra.mxu0 0
        %984 = vmatprep.subr.bf16.mxu0 0
        %985 = vmatpush1.bf16.msra.mxu0 0
        %986 = vmatprep.subr.bf16.mxu0 0
        %987 = vmatpush1.bf16.msra.mxu0 0
        %988 = vmatprep.subr.bf16.mxu0 0
        %989 = vmatpush1.bf16.msra.mxu0 0
        %990 = vmatprep.subr.bf16.mxu0 0
        %991 = vmatpush1.bf16.msra.mxu0 0
        %992 = vmatprep.subr.bf16.mxu0 0
        %993 = vmatpush1.bf16.msra.mxu0 0
        %994 = vmatprep.subr.bf16.mxu0 0
        %995 = vmatpush1.bf16.msra.mxu0 0
        %996 = vmatprep.subr.bf16.mxu0 0
        %997 = vmatpush1.bf16.msra.mxu0 0
        %998 = vmatprep.subr.bf16.mxu0 0
        %999 = vmatpush1.bf16.msra.mxu0 0
        %1000 = vmatprep.subr.bf16.mxu0 0
        %1001 = vmatpush1.bf16.msra.mxu0 0
        %1002 = vmatprep.subr.bf16.mxu0 0
        %1003 = vmatpush1.bf16.msra.mxu0 0
        %1004 = vmatprep.mubr.bf16.mxu0 0
        %1005 = vmatmul.mubr.bf16.gmra.mrb[0].mxu0 %v961
        %v1006 = vpop.f32.mrb[0].mxu0
        %v1007 = vadd.f32 0.0, %v1006
        %v1008 = vpop.f32.mrb[0].mxu0
        %v1009 = vadd.f32 0.0, %v1008
        %v1010 = vpop.f32.mrb[0].mxu0
        %v1011 = vpop.f32.mrb[0].mxu0
        %1012 = vdwg.mxu0
        %1013 = vmatprep.subr.bf16.mxu0 0
        %1014 = vmatpush1.bf16.msra.mxu0 %v970
        %1015 = vmatprep.subr.bf16.mxu0 0
        %1016 = vmatpush1.bf16.msra.mxu0 0
        %1017 = vmatprep.subr.bf16.mxu0 0
        %1018 = vmatpush1.bf16.msra.mxu0 0
        %1019 = vmatprep.subr.bf16.mxu0 0
        %1020 = vmatpush1.bf16.msra.mxu0 0
        %1021 = vmatprep.subr.bf16.mxu0 0
        %1022 = vmatpush1.bf16.msra.mxu0 0
        %1023 = vmatprep.subr.bf16.mxu0 0
        %1024 = vmatpush1.bf16.msra.mxu0 0
        %1025 = vmatprep.subr.bf16.mxu0 0
        %1026 = vmatpush1.bf16.msra.mxu0 0
        %1027 = vmatprep.subr.bf16.mxu0 0
        %1028 = vmatpush1.bf16.msra.mxu0 0
        %1029 = vmatprep.subr.bf16.mxu0 0
        %1030 = vmatpush1.bf16.msra.mxu0 0
        %1031 = vmatprep.subr.bf16.mxu0 0
        %1032 = vmatpush1.bf16.msra.mxu0 0
        %1033 = vmatprep.subr.bf16.mxu0 0
        %1034 = vmatpush1.bf16.msra.mxu0 0
        %1035 = vmatprep.subr.bf16.mxu0 0
        %1036 = vmatpush1.bf16.msra.mxu0 0
        %1037 = vmatprep.subr.bf16.mxu0 0
        %1038 = vmatpush1.bf16.msra.mxu0 0
        %1039 = vmatprep.subr.bf16.mxu0 0
        %1040 = vmatpush1.bf16.msra.mxu0 0
        %1041 = vmatprep.subr.bf16.mxu0 0
        %1042 = vmatpush1.bf16.msra.mxu0 0
        %1043 = vmatprep.subr.bf16.mxu0 0
        %1044 = vmatpush1.bf16.msra.mxu0 0
        %1045 = vmatprep.mubr.bf16.mxu0 0
        %1046 = vmatmul.mubr.bf16.gmra.mrb[0].mxu0 %v961
        %v1047 = vpop.f32.mrb[0].mxu0
        %v1048 = vadd.f32 0.0, %v1047
        %v1049 = vpop.f32.mrb[0].mxu0
        %v1050 = vpop.f32.mrb[0].mxu0
        %v1051 = vpop.f32.mrb[0].mxu0
        %1052 = vdwg.mxu0
        %v1053 = vadd.f32 %v924, %v1007
        %v1054 = vadd.f32 %v925, %v1009
        %v1055 = vadd.f32 %v926, %v1048
        %v1056 = vld [vmem:[%s168] sm:$0xff]
        %s1057 = scalar_lea.vmem %s1, 28
        %v1058 = vld [vmem:[%s1057] sm:$0xf]
        %v1060 = vcombine.high %v1056, %v1056
        %v1062 = vunpack.c.l.s4 1983009808
        %v1063 = vunpack.c.0.s8 %v1062
        %v1064 = vlaneseq
        %v1065 = vshrl.u32 %v1064, 7
        %v1066 = vsub.s32 %v1063, %v1065
        %v1067 = vrot.slane %v1056, %v1066
        %v1069 = vunpack.c.l.s4 1983009808
        %v1070 = vunpack.c.0.s8 %v1069
        %v1071 = vlaneseq
        %v1072 = vshrl.u32 %v1071, 7
        %v1073 = vsub.s32 %v1070, %v1072
        %v1074 = vrot.slane %v1060, %v1073
        %v1075 = vcombine.high %v1067, %v1067
        %v1076 = vcombine.high %v1074, %v1074
        %1077 = vrot.lane.b32.xlu0 %v1067, 91
        %v1078 = vpop.permute.xlu0 %1077
        %1079 = vrot.lane.b32.xlu0 %v1075, 91
        %v1080 = vpop.permute.xlu0 %1079
        %1081 = vrot.lane.b32.xlu0 %v1074, 91
        %v1082 = vpop.permute.xlu0 %1081
        %1083 = vrot.lane.b32.xlu0 %v1076, 91
        %v1084 = vpop.permute.xlu0 %1083
        %vm1085 = vcmask 744448
        %v1086 = vsel %vm1085, %v1078, %v1080
        %v1087 = vsel %vm1085, %v1080, %v1082
        %v1088 = vsel %vm1085, %v1082, %v1084
        %v1090 = vsel %vm206, %v1058, 0
        %v1093 = vsel %vm210, %v1086, 0
        %v1096 = vsel %vm210, %v1087, 0
        %v1099 = vsel %vm210, %v1088, 0
        %1101 = vmatprep.subr.bf16.mxu0 %v1096
        %1102 = vmatpush1.bf16.msra.mxu0 %v1093
        %1103 = vmatprep.subr.bf16.mxu0 0
        %1104 = vmatpush1.bf16.msra.mxu0 0
        %1105 = vmatprep.subr.bf16.mxu0 0
        %1106 = vmatpush1.bf16.msra.mxu0 0
        %1107 = vmatprep.subr.bf16.mxu0 0
        %1108 = vmatpush1.bf16.msra.mxu0 0
        %1109 = vmatprep.subr.bf16.mxu0 0
        %1110 = vmatpush1.bf16.msra.mxu0 0
        %1111 = vmatprep.subr.bf16.mxu0 0
        %1112 = vmatpush1.bf16.msra.mxu0 0
        %1113 = vmatprep.subr.bf16.mxu0 0
        %1114 = vmatpush1.bf16.msra.mxu0 0
        %1115 = vmatprep.subr.bf16.mxu0 0
        %1116 = vmatpush1.bf16.msra.mxu0 0
        %1117 = vmatprep.subr.bf16.mxu0 0
        %1118 = vmatpush1.bf16.msra.mxu0 0
        %1119 = vmatprep.subr.bf16.mxu0 0
        %1120 = vmatpush1.bf16.msra.mxu0 0
        %1121 = vmatprep.subr.bf16.mxu0 0
        %1122 = vmatpush1.bf16.msra.mxu0 0
        %1123 = vmatprep.subr.bf16.mxu0 0
        %1124 = vmatpush1.bf16.msra.mxu0 0
        %1125 = vmatprep.subr.bf16.mxu0 0
        %1126 = vmatpush1.bf16.msra.mxu0 0
        %1127 = vmatprep.subr.bf16.mxu0 0
        %1128 = vmatpush1.bf16.msra.mxu0 0
        %1129 = vmatprep.subr.bf16.mxu0 0
        %1130 = vmatpush1.bf16.msra.mxu0 0
        %1131 = vmatprep.subr.bf16.mxu0 0
        %1132 = vmatpush1.bf16.msra.mxu0 0
        %1133 = vmatprep.mubr.bf16.mxu0 0
        %1134 = vmatmul.mubr.bf16.gmra.mrb[0].mxu0 %v1090
        %v1135 = vpop.f32.mrb[0].mxu0
        %v1136 = vadd.f32 0.0, %v1135
        %v1137 = vpop.f32.mrb[0].mxu0
        %v1138 = vadd.f32 0.0, %v1137
        %v1139 = vpop.f32.mrb[0].mxu0
        %v1140 = vpop.f32.mrb[0].mxu0
        %1141 = vdwg.mxu0
        %1142 = vmatprep.subr.bf16.mxu0 0
        %1143 = vmatpush1.bf16.msra.mxu0 %v1099
        %1144 = vmatprep.subr.bf16.mxu0 0
        %1145 = vmatpush1.bf16.msra.mxu0 0
        %1146 = vmatprep.subr.bf16.mxu0 0
        %1147 = vmatpush1.bf16.msra.mxu0 0
        %1148 = vmatprep.subr.bf16.mxu0 0
        %1149 = vmatpush1.bf16.msra.mxu0 0
        %1150 = vmatprep.subr.bf16.mxu0 0
        %1151 = vmatpush1.bf16.msra.mxu0 0
        %1152 = vmatprep.subr.bf16.mxu0 0
        %1153 = vmatpush1.bf16.msra.mxu0 0
        %1154 = vmatprep.subr.bf16.mxu0 0
        %1155 = vmatpush1.bf16.msra.mxu0 0
        %1156 = vmatprep.subr.bf16.mxu0 0
        %1157 = vmatpush1.bf16.msra.mxu0 0
        %1158 = vmatprep.subr.bf16.mxu0 0
        %1159 = vmatpush1.bf16.msra.mxu0 0
        %1160 = vmatprep.subr.bf16.mxu0 0
        %1161 = vmatpush1.bf16.msra.mxu0 0
        %1162 = vmatprep.subr.bf16.mxu0 0
        %1163 = vmatpush1.bf16.msra.mxu0 0
        %1164 = vmatprep.subr.bf16.mxu0 0
        %1165 = vmatpush1.bf16.msra.mxu0 0
        %1166 = vmatprep.subr.bf16.mxu0 0
        %1167 = vmatpush1.bf16.msra.mxu0 0
        %1168 = vmatprep.subr.bf16.mxu0 0
        %1169 = vmatpush1.bf16.msra.mxu0 0
        %1170 = vmatprep.subr.bf16.mxu0 0
        %1171 = vmatpush1.bf16.msra.mxu0 0
        %1172 = vmatprep.subr.bf16.mxu0 0
        %1173 = vmatpush1.bf16.msra.mxu0 0
        %1174 = vmatprep.mubr.bf16.mxu0 0
        %1175 = vmatmul.mubr.bf16.gmra.mrb[0].mxu0 %v1090
        %v1176 = vpop.f32.mrb[0].mxu0
        %v1177 = vadd.f32 0.0, %v1176
        %v1178 = vpop.f32.mrb[0].mxu0
        %v1179 = vpop.f32.mrb[0].mxu0
        %v1180 = vpop.f32.mrb[0].mxu0
        %1181 = vdwg.mxu0
        %v1182 = vadd.f32 %v1053, %v1136
        %v1183 = vadd.f32 %v1054, %v1138
        %v1184 = vadd.f32 %v1055, %v1177
        %v1185 = vld [vmem:[%s168] sm:$0xff]
        %s1186 = scalar_lea.vmem %s1, 32
        %v1187 = vld [vmem:[%s1186] sm:$0xf]
        %v1189 = vcombine.high %v1185, %v1185
        %v1191 = vunpack.c.l.s4 1983009808
        %v1192 = vunpack.c.0.s8 %v1191
        %v1193 = vlaneseq
        %v1194 = vshrl.u32 %v1193, 7
        %v1195 = vsub.s32 %v1192, %v1194
        %v1196 = vrot.slane %v1185, %v1195
        %v1198 = vunpack.c.l.s4 1983009808
        %v1199 = vunpack.c.0.s8 %v1198
        %v1200 = vlaneseq
        %v1201 = vshrl.u32 %v1200, 7
        %v1202 = vsub.s32 %v1199, %v1201
        %v1203 = vrot.slane %v1189, %v1202
        %v1204 = vcombine.high %v1196, %v1196
        %v1205 = vcombine.high %v1203, %v1203
        %1206 = vrot.lane.b32.xlu0 %v1196, 90
        %v1207 = vpop.permute.xlu0 %1206
        %1208 = vrot.lane.b32.xlu0 %v1204, 90
        %v1209 = vpop.permute.xlu0 %1208
        %1210 = vrot.lane.b32.xlu0 %v1203, 90
        %v1211 = vpop.permute.xlu0 %1210
        %1212 = vrot.lane.b32.xlu0 %v1205, 90
        %v1213 = vpop.permute.xlu0 %1212
        %vm1214 = vcmask 736256
        %v1215 = vsel %vm1214, %v1207, %v1209
        %v1216 = vsel %vm1214, %v1209, %v1211
        %v1217 = vsel %vm1214, %v1211, %v1213
        %v1219 = vsel %vm206, %v1187, 0
        %v1222 = vsel %vm210, %v1215, 0
        %v1225 = vsel %vm210, %v1216, 0
        %v1228 = vsel %vm210, %v1217, 0
        %1230 = vmatprep.subr.bf16.mxu0 %v1225
        %1231 = vmatpush1.bf16.msra.mxu0 %v1222
        %1232 = vmatprep.subr.bf16.mxu0 0
        %1233 = vmatpush1.bf16.msra.mxu0 0
        %1234 = vmatprep.subr.bf16.mxu0 0
        %1235 = vmatpush1.bf16.msra.mxu0 0
        %1236 = vmatprep.subr.bf16.mxu0 0
        %1237 = vmatpush1.bf16.msra.mxu0 0
        %1238 = vmatprep.subr.bf16.mxu0 0
        %1239 = vmatpush1.bf16.msra.mxu0 0
        %1240 = vmatprep.subr.bf16.mxu0 0
        %1241 = vmatpush1.bf16.msra.mxu0 0
        %1242 = vmatprep.subr.bf16.mxu0 0
        %1243 = vmatpush1.bf16.msra.mxu0 0
        %1244 = vmatprep.subr.bf16.mxu0 0
        %1245 = vmatpush1.bf16.msra.mxu0 0
        %1246 = vmatprep.subr.bf16.mxu0 0
        %1247 = vmatpush1.bf16.msra.mxu0 0
        %1248 = vmatprep.subr.bf16.mxu0 0
        %1249 = vmatpush1.bf16.msra.mxu0 0
        %1250 = vmatprep.subr.bf16.mxu0 0
        %1251 = vmatpush1.bf16.msra.mxu0 0
        %1252 = vmatprep.subr.bf16.mxu0 0
        %1253 = vmatpush1.bf16.msra.mxu0 0
        %1254 = vmatprep.subr.bf16.mxu0 0
        %1255 = vmatpush1.bf16.msra.mxu0 0
        %1256 = vmatprep.subr.bf16.mxu0 0
        %1257 = vmatpush1.bf16.msra.mxu0 0
        %1258 = vmatprep.subr.bf16.mxu0 0
        %1259 = vmatpush1.bf16.msra.mxu0 0
        %1260 = vmatprep.subr.bf16.mxu0 0
        %1261 = vmatpush1.bf16.msra.mxu0 0
        %1262 = vmatprep.mubr.bf16.mxu0 0
        %1263 = vmatmul.mubr.bf16.gmra.mrb[0].mxu0 %v1219
        %v1264 = vpop.f32.mrb[0].mxu0
        %v1265 = vadd.f32 0.0, %v1264
        %v1266 = vpop.f32.mrb[0].mxu0
        %v1267 = vadd.f32 0.0, %v1266
        %v1268 = vpop.f32.mrb[0].mxu0
        %v1269 = vpop.f32.mrb[0].mxu0
        %1270 = vdwg.mxu0
        %1271 = vmatprep.subr.bf16.mxu0 0
        %1272 = vmatpush1.bf16.msra.mxu0 %v1228
        %1273 = vmatprep.subr.bf16.mxu0 0
        %1274 = vmatpush1.bf16.msra.mxu0 0
        %1275 = vmatprep.subr.bf16.mxu0 0
        %1276 = vmatpush1.bf16.msra.mxu0 0
        %1277 = vmatprep.subr.bf16.mxu0 0
        %1278 = vmatpush1.bf16.msra.mxu0 0
        %1279 = vmatprep.subr.bf16.mxu0 0
        %1280 = vmatpush1.bf16.msra.mxu0 0
        %1281 = vmatprep.subr.bf16.mxu0 0
        %1282 = vmatpush1.bf16.msra.mxu0 0
        %1283 = vmatprep.subr.bf16.mxu0 0
        %1284 = vmatpush1.bf16.msra.mxu0 0
        %1285 = vmatprep.subr.bf16.mxu0 0
        %1286 = vmatpush1.bf16.msra.mxu0 0
        %1287 = vmatprep.subr.bf16.mxu0 0
        %1288 = vmatpush1.bf16.msra.mxu0 0
        %1289 = vmatprep.subr.bf16.mxu0 0
        %1290 = vmatpush1.bf16.msra.mxu0 0
        %1291 = vmatprep.subr.bf16.mxu0 0
        %1292 = vmatpush1.bf16.msra.mxu0 0
        %1293 = vmatprep.subr.bf16.mxu0 0
        %1294 = vmatpush1.bf16.msra.mxu0 0
        %1295 = vmatprep.subr.bf16.mxu0 0
        %1296 = vmatpush1.bf16.msra.mxu0 0
        %1297 = vmatprep.subr.bf16.mxu0 0
        %1298 = vmatpush1.bf16.msra.mxu0 0
        %1299 = vmatprep.subr.bf16.mxu0 0
        %1300 = vmatpush1.bf16.msra.mxu0 0
        %1301 = vmatprep.subr.bf16.mxu0 0
        %1302 = vmatpush1.bf16.msra.mxu0 0
        %1303 = vmatprep.mubr.bf16.mxu0 0
        %1304 = vmatmul.mubr.bf16.gmra.mrb[0].mxu0 %v1219
        %v1305 = vpop.f32.mrb[0].mxu0
        %v1306 = vadd.f32 0.0, %v1305
        %v1307 = vpop.f32.mrb[0].mxu0
        %v1308 = vpop.f32.mrb[0].mxu0
        %v1309 = vpop.f32.mrb[0].mxu0
        %1310 = vdwg.mxu0
        %v1311 = vadd.f32 %v1182, %v1265
        %v1312 = vadd.f32 %v1183, %v1267
        %v1313 = vadd.f32 %v1184, %v1306
        %1315 = vset.pattern.permute.xlu0 0
        %1316 = vperm.xlu0 %1315, %v170
        %v1317 = vpop.permute.xlu0 %1316
        %v1319 = vadd.f32 %v1311, %v1317
        %v1320 = vadd.f32 %v1312, %v1317
        %v1321 = vadd.f32 %v1313, %v1317
        %v1322 = vxor.u32 %v1319, 2147483648
        %v1323 = vxor.u32 %v1320, 2147483648
        %v1324 = vxor.u32 %v1321, 2147483648
        %v1325 = vmul.f32 %v1322, 1.442695
        %v1326 = vpow.pop %v1325
        %v1327 = vmul.f32 %v1323, 1.442695
        %v1328 = vpow.pop %v1327
        %v1329 = vmul.f32 %v1324, 1.442695
        %v1330 = vpow.pop %v1329
        %v1331 = vadd.f32 %v1326, 1.0
        %v1332 = vadd.f32 %v1328, 1.0
        %v1333 = vadd.f32 %v1330, 1.0
        %v1334 = vrcp.pop %v1331
        %v1335 = vmul.f32 1.0, %v1334
        %v1336 = vrcp.pop %v1332
        %v1337 = vmul.f32 1.0, %v1336
        %v1338 = vrcp.pop %v1333
        %v1339 = vmul.f32 1.0, %v1338
        %v1340 = vmul.f32 %v1319, %v1335
        %v1341 = vmul.f32 %v1320, %v1337
        %v1342 = vmul.f32 %v1321, %v1339
        %v1343 = vpack.c.bf16 %v1340, %v1340
        %v1344 = vpack.c.bf16 %v1341, %v1341
        %v1345 = vpack.c.bf16 %v1342, %v1342
        %v1349 = vunpack.c.l.b16 %v1343
        %v1350 = vunpack.c.l.b16 %v1344
        %v1351 = vunpack.c.l.b16 %v1345
        %v1352 = vpack.c.b16 %v1350, %v1349
        %v1353 = vpack.c.b16 %v1351, %v1351
        %1356 = vst [vmem:[%s163] sm:$0xff] %v1352
        %1357 = vst [vmem:[%s163 + $0x8] sm:$0xf] %v1353
        %s1358 = sand.u32 %s93, 1
        %s1359 = scalar_lea.sflag [#allocation3], %s1358
        %s1360 = sand.u32 %s93, 1
        %s1361 = smul.addr %s1360, 12
        %s1362 = scalar_lea.vmem [#allocation2], %s1361
        // Predicated region
        $region33: #{tpu_custom_call.1} parent=31 // pred_check
          %p1363 = pneg %p103
        $region34: #{tpu_custom_call.1} parent=31 // pred_check_branch
          %1365 = sbr.rel (%p1363) target = $region36
        $region35: #{tpu_custom_call.1} parent=31 // pred_region
          %s1367 = ssub.s32 192, 192
          %1368 = vsyncadd %s1359, %s1367
          %s1369 = smul.addr %s17, 3
          %s1370 = smul.addr %s1369, 64
          %s1371 = scalar_lea.hbm %s3, %s1370
          %s1373 = sshll.u32 %s1362, 4
          %s1374 = int_to_ptr.vmem [resolvable:$true] %s1373
          %1376 = dma.vmem_to_hbm [thread:$0]  %s1374, 192, %s1371, %s1359
        $region36: #{tpu_custom_call.1} parent=31 // pred_fallthru
          _
      $region32: #{tpu_custom_call.1} parent=5 // pred_fallthru
        _
      %p1377 = scmp.le.s32.totalorder 2, %s12
      // Predicated region
      $region37: #{tpu_custom_call.1} parent=5 // pred_check
        %p1378 = pneg %p1377
      $region38: #{tpu_custom_call.1} parent=5 // pred_check_branch
        %1380 = sbr.rel (%p1378) target = $region40
      $region39: #{tpu_custom_call.1} parent=5 // pred_region
        %s1381 = ssub.s32 %s12, 2
        // Predicated region
        $region41: #{tpu_custom_call.1} parent=39 // pred_check
          %p1382 = pneg %p109
        $region42: #{tpu_custom_call.1} parent=39 // pred_check_branch
          %1384 = sbr.rel (%p1382) target = $region44
        $region43: #{tpu_custom_call.1} parent=39 // pred_region
          %s1385 = sand.u32 %s94, 1
          %s1386 = scalar_lea.sflag [#allocation3], %s1385
          %s1387 = sand.u32 %s94, 1
          %s1388 = smul.addr %s1387, 12
          %s1389 = scalar_lea.vmem [#allocation2], %s1388
          %1390 = dma.done %s1386, 192
        $region44: #{tpu_custom_call.1} parent=39 // pred_fallthru
          _
      $region40: #{tpu_custom_call.1} parent=5 // pred_fallthru
        _
    $region6: #{tpu_custom_call.1} parent=1 // loop_footer
      %s16 = sadd.s32 1, %s12
    $region7: #{tpu_custom_call.1} parent=1 // loop_footer_branch
      %11 = sbr.rel target = $region3
    $region8: #{tpu_custom_call.1} parent=1 // loop_exit
      _
    %1391 = vsyncpa [#allocation3], 1
    %s1392 = scalar_lea.sflag [#allocation3], 1
    %1393 = vsyncpa %s1392, 1

</llo_original>
